<compile_context>
chip_gen: v7x
topology: tpu7x:2x2x1
jax: 0.10.0
libtpu: 0.0.40
codegen_flags: <defaults>
</compile_context>

<pallas_src>
import math

import jax
import jax.numpy as jnp
from jax.experimental import pallas as pl
from jax.experimental.pallas import tpu as pltpu


def _pick_images_per_step(N, C, OC, HW, scratch_itemsize, cap=32,
                          vmem_budget=12 * 1024 * 1024):
    """Largest divisor of N that fits the per-step VMEM budget, preferring a
    grid of at least 2 so v7x's two TensorCores both get work."""
    def step_bytes(nb):
        io = 2 * nb * (C + (C + OC)) * HW * 4          # double-buffered in+out (f32)
        scr = nb * 9 * C * HW * scratch_itemsize       # patch scratch (single copy)
        return io + scr

    cands = [d for d in range(1, min(N, cap) + 1)
             if N % d == 0 and step_bytes(d) <= vmem_budget]
    if not cands:
        cands = [1]
    pref = [d for d in cands if N // d >= 2]           # keep grid >= 2 (v7x dual-TC)
    return max(pref) if pref else max(cands)


def xdense_simple_unit(x_nchw, gamma, beta, run_mean, run_var, weight, mask,
                       eps=1e-5, images_per_step=None,
                       mxu_dtype=jnp.float32, cast_early=True):
    """XDenseSimpleUnit forward (eval mode). NCHW in / NCHW out."""
    N, C, H, W = x_nchw.shape
    OC = weight.shape[0]            # inc_channels = out_channels - in_channels
    HW = H * W

    use_lowp = mxu_dtype != jnp.float32
    elem_dtype = mxu_dtype if (use_lowp and cast_early) else jnp.float32

    # ---- tiny one-time glue in XLA -----------------------------------------
    scale = gamma / jnp.sqrt(run_var + eps)                        # (C,)
    shift = beta - run_mean * scale                                # (C,)
    bn_params = jnp.concatenate(
        [scale.astype(jnp.float32), shift.astype(jnp.float32)]).reshape(2 * C, 1)

    # Masked conv weights laid out (OC, 9*C); patch rows ordered (kh, kw, ic).
    w2d = jnp.transpose(weight * mask, (0, 2, 3, 1)).reshape(OC, 9 * C)
    w2d = w2d.astype(mxu_dtype if use_lowp else jnp.float32)

    # Per-tap flat shifts and boundary-validity masks over p = h*W + w,
    # pre-expanded to (9, C, HW) so in-kernel masking is one plain multiply.
    hh = jnp.arange(H).reshape(H, 1)
    ww = jnp.arange(W).reshape(1, W)
    tap_shifts = []
    valid_rows = []
    for kh in range(3):
        for kw in range(3):
            dh, dw = kh - 1, kw - 1
            tap_shifts.append(dh * W + dw)
            valid = ((hh + dh >= 0) & (hh + dh < H) &
                     (ww + dw >= 0) & (ww + dw < W))
            valid_rows.append(valid.reshape(HW))
    tap_shifts = tuple(tap_shifts)
    tap_masks = jnp.stack(valid_rows, axis=0).astype(elem_dtype)       # (9, HW)
    tap_masks = jnp.broadcast_to(tap_masks[:, None, :], (9, C, HW))    # (9, C, HW)
    tap_masks = jnp.asarray(tap_masks, dtype=elem_dtype)

    # NCHW -> (N, C, H*W): free reshape, identical memory layout.
    x_flat = x_nchw.astype(jnp.float32).reshape(N, C, HW)

    # Images per grid step: amortize per-step overhead under a VMEM budget.
    if images_per_step is None:
        nb = _pick_images_per_step(N, C, OC, HW,
                                   jnp.dtype(elem_dtype).itemsize)
    else:
        nb = images_per_step
    assert N % nb == 0, "images_per_step must divide N"
    grid = (N // nb,)

    def kernel(x_ref, bn_ref, w_ref, masks_ref, o_ref, patches_ref):
        x = x_ref[...]                                             # (nb, C, HW)

        # Identity branch: one aligned slab store of the whole input block.
        o_ref[:, :C, :] = x

        # BatchNorm (eval, folded) + ReLU on the whole block at once.
        bn_scale = bn_ref[:C, :]                                   # (C, 1)
        bn_shift = bn_ref[C:, :]                                   # (C, 1)
        y = jnp.maximum(x * bn_scale[None] + bn_shift[None], 0.0)
        if use_lowp and cast_early:
            y = y.astype(mxu_dtype)      # v6e/v7x: halve roll/mask/scratch traffic
        # Free reshape (C is a multiple of the sublane tile): roll each row of
        # the lane axis independently -> per-image spatial shift.
        y2 = y.reshape(nb * C, HW)

        # Build im2col patches in an explicit aligned VMEM scratch:
        # one XLU roll + one VPU mask-multiply per tap over the whole block.
        for t, s in enumerate(tap_shifts):
            if s == 0:                                             # center tap
                tap = y
            else:
                rolled = pltpu.roll(y2, (-s) % HW, axis=1).reshape(nb, C, HW)
                tap = rolled * masks_ref[t]
            patches_ref[:, t * C:(t + 1) * C, :] = tap

        # Conv branch (dropout p=0 / eval mode is identity): one MXU matmul
        # per image straight from the scratch, aligned lane-dense slab stores.
        lhs = w_ref[...]                                           # (OC, 9C)
        for n in range(nb):
            rhs = patches_ref[n]                                   # (9C, HW)
            if rhs.dtype != lhs.dtype:                             # v5e: cast at dot only
                rhs = rhs.astype(lhs.dtype)
            conv = jnp.dot(lhs, rhs, preferred_element_type=jnp.float32)
            o_ref[n, C:, :] = conv.astype(o_ref.dtype)

    flops = 2 * N * OC * 9 * C * HW
    bytes_accessed = (x_flat.size * 4 + N * (C + OC) * HW * 4
                      + w2d.size * jnp.dtype(w2d.dtype).itemsize
                      + tap_masks.size * jnp.dtype(elem_dtype).itemsize
                      + 2 * C * 4)

    out_flat = pl.pallas_call(
        kernel,
        out_shape=jax.ShapeDtypeStruct((N, C + OC, HW), jnp.float32),
        grid_spec=pltpu.PrefetchScalarGridSpec(
            num_scalar_prefetch=0,
            grid=grid,
            in_specs=[
                pl.BlockSpec((nb, C, HW), lambda b: (b, 0, 0)),
                pl.BlockSpec((2 * C, 1), lambda b: (0, 0)),
                pl.BlockSpec((OC, 9 * C), lambda b: (0, 0)),
                pl.BlockSpec((9, C, HW), lambda b: (0, 0, 0)),
            ],
            out_specs=pl.BlockSpec((nb, C + OC, HW), lambda b: (b, 0, 0)),
            scratch_shapes=[pltpu.VMEM((nb, 9 * C, HW), elem_dtype)],
        ),
        compiler_params=pltpu.CompilerParams(
            dimension_semantics=("parallel",)),
        cost_estimate=pl.CostEstimate(flops=flops, transcendentals=0,
                                      bytes_accessed=bytes_accessed),
    )(x_flat, bn_params, w2d, tap_masks)

    return out_flat.reshape(N, C + OC, H, W)


def _make_xconv_mask(key, oc, c, kh, kw, expand_ratio):
    """XConv2d.init_parameters: per output channel, ceil(c*kh*kw/expand_ratio)
    randomly chosen weight positions are kept (mask=1), the rest are zeroed."""
    n = c * kh * kw
    expand_size = math.ceil(n / expand_ratio)
    keys = jax.random.split(key, oc)

    def one_row(k):
        perm = jax.random.permutation(k, n)
        return jnp.zeros((n,), jnp.float32).at[perm[:expand_size]].set(1.0)

    m = jax.vmap(one_row)(keys)  # (oc, c*kh*kw)
    return m.reshape(oc, c, kh, kw)


def _reference(x, gamma, beta, run_mean, run_var, weight, mask, eps=1e-5):
    """Pure-JAX reference mirroring the PyTorch eval-mode forward."""
    bcast = lambda v: v[None, :, None, None]
    y = (x - bcast(run_mean)) / jnp.sqrt(bcast(run_var) + eps)
    y = y * bcast(gamma) + bcast(beta)
    y = jnp.maximum(y, 0.0)
    y = jax.lax.conv_general_dilated(
        y, weight * mask, window_strides=(1, 1), padding=((1, 1), (1, 1)),
        dimension_numbers=("NCHW", "OIHW", "NCHW"))
    return jnp.concatenate([x, y], axis=1)


if __name__ == "__main__":
    # Module config (small, CIFAR-like): in=16, out=32 -> inc_channels=16.
    in_channels = 16
    out_channels = 32
    inc_channels = out_channels - in_channels
    expand_ratio = 2
    dropout_rate = 0.0  # use_dropout = False; eval-mode dropout is identity
    N, H, W = 8, 16, 16

    key = jax.random.PRNGKey(0)
    k_x, k_w, k_g, k_b, k_m, k_v, k_mask = jax.random.split(key, 7)

    x = jax.random.normal(k_x, (N, in_channels, H, W), jnp.float32)

    weight = 0.1 * jax.random.normal(
        k_w, (inc_channels, in_channels, 3, 3), jnp.float32)
    gamma = 1.0 + 0.1 * jax.random.normal(k_g, (in_channels,), jnp.float32)
    beta = 0.1 * jax.random.normal(k_b, (in_channels,), jnp.float32)
    run_mean = 0.1 * jax.random.normal(k_m, (in_channels,), jnp.float32)
    run_var = 0.5 + jnp.abs(jax.random.normal(k_v, (in_channels,), jnp.float32))
    mask = _make_xconv_mask(k_mask, inc_channels, in_channels, 3, 3,
                            expand_ratio)

    # TODO(synk): training-mode BN (batch stats) and dropout p>0 (RNG) are not
    # implemented; the module config here uses eval-mode BN and p=0.
    # f32 MXU path for the correctness check; pass mxu_dtype=jnp.bfloat16
    # (cast_early=True on v6e/v7x, False on v5e) for the fast low-precision path.
    out = xdense_simple_unit(x, gamma, beta, run_mean, run_var, weight, mask)
    out = jax.block_until_ready(out)

    assert out.shape == (N, out_channels, H, W), out.shape

    ref = _reference(x, gamma, beta, run_mean, run_var, weight, mask)
    assert jnp.allclose(out, ref, atol=1e-4, rtol=1e-4), (
        float(jnp.max(jnp.abs(out - ref))))

    print("KERNEL_OK")
</pallas_src>

<mosaic_0001>
module attributes {stable_mosaic.version = 11 : i64} {
  func.func @kernel(%arg0: i32, %arg1: memref<4x16x256xf32, #tpu.memory_space<vmem>>, %arg2: memref<32x1xf32, #tpu.memory_space<vmem>>, %arg3: memref<16x144xf32, #tpu.memory_space<vmem>>, %arg4: memref<9x16x256xf32, #tpu.memory_space<vmem>>, %arg5: memref<4x32x256xf32, #tpu.memory_space<vmem>>, %arg6: memref<4x144x256xf32, #tpu.memory_space<vmem>>) attributes {dimension_semantics = [#tpu.dimension_semantics<parallel>], iteration_bounds = array<i64: 2>, scalar_prefetch = 0 : i64, scratch_operands = 1 : i64, tpu.core_type = #tpu.core_type<tc>, window_params = [{transform_indices = @transform_0, window_bounds = array<i64: 4, 16, 256>}, {pipeline_mode = #tpu.pipeline_mode<synchronous>, transform_indices = @transform_1, window_bounds = array<i64: 32, 1>}, {pipeline_mode = #tpu.pipeline_mode<synchronous>, transform_indices = @transform_2, window_bounds = array<i64: 16, 144>}, {pipeline_mode = #tpu.pipeline_mode<synchronous>, transform_indices = @transform_3, window_bounds = array<i64: 9, 16, 256>}, {transform_indices = @transform_4, window_bounds = array<i64: 4, 32, 256>}]} {
    %c0 = arith.constant 0 : index
    %c0_0 = arith.constant 0 : index
    %c0_1 = arith.constant 0 : index
    %0 = vector.load %arg1[%c0, %c0_0, %c0_1] : memref<4x16x256xf32, #tpu.memory_space<vmem>>, vector<4x16x256xf32>
    %c0_2 = arith.constant 0 : index
    %c0_3 = arith.constant 0 : index
    %c0_4 = arith.constant 0 : index
    %1 = vector.load %arg5[%c0_2, %c0_3, %c0_4] : memref<4x32x256xf32, #tpu.memory_space<vmem>>, vector<4x16x256xf32>
    tpu.vector_store %arg5[%c0_2, %c0_3, %c0_4], %0 {strides = array<i32>} : memref<4x32x256xf32, #tpu.memory_space<vmem>>, vector<4x16x256xf32>,
    %c0_5 = arith.constant 0 : index
    %c0_6 = arith.constant 0 : index
    %2 = vector.load %arg2[%c0_5, %c0_6] : memref<32x1xf32, #tpu.memory_space<vmem>>, vector<16x1xf32>
    %c16 = arith.constant 16 : index
    %c0_7 = arith.constant 0 : index
    %3 = vector.load %arg2[%c16, %c0_7] : memref<32x1xf32, #tpu.memory_space<vmem>>, vector<16x1xf32>
    %4 = vector.shape_cast %2 : vector<16x1xf32> to vector<1x16x1xf32>
    %5 = vector.broadcast %4 : vector<1x16x1xf32> to vector<4x16x256xf32>
    %6 = arith.mulf %0, %5 : vector<4x16x256xf32>
    %7 = vector.shape_cast %3 : vector<16x1xf32> to vector<1x16x1xf32>
    %8 = vector.broadcast %7 : vector<1x16x1xf32> to vector<4x16x256xf32>
    %9 = arith.addf %6, %8 : vector<4x16x256xf32>
    %cst = arith.constant 0.000000e+00 : f32
    %10 = vector.broadcast %cst : f32 to vector<4x16x256xf32>
    %11 = arith.maximumf %9, %10 : vector<4x16x256xf32>
    %12 = vector.shape_cast %11 : vector<4x16x256xf32> to vector<64x256xf32>
    %c17_i32 = arith.constant 17 : i32
    %13 = tpu.dynamic_rotate %12 by %c17_i32 dim 1 : vector<64x256xf32>, i32 -> vector<64x256xf32>
    %14 = vector.shape_cast %13 : vector<64x256xf32> to vector<4x16x256xf32>
    %c0_8 = arith.constant 0 : index
    %c0_9 = arith.constant 0 : index
    %c0_10 = arith.constant 0 : index
    %15 = vector.load %arg4[%c0_8, %c0_9, %c0_10] : memref<9x16x256xf32, #tpu.memory_space<vmem>>, vector<1x16x256xf32>
    %16 = vector.shape_cast %15 : vector<1x16x256xf32> to vector<16x256xf32>
    %17 = vector.shape_cast %16 : vector<16x256xf32> to vector<1x16x256xf32>
    %18 = vector.broadcast %17 : vector<1x16x256xf32> to vector<4x16x256xf32>
    %19 = arith.mulf %14, %18 : vector<4x16x256xf32>
    %c0_11 = arith.constant 0 : index
    %c0_12 = arith.constant 0 : index
    %c0_13 = arith.constant 0 : index
    %20 = vector.load %arg6[%c0_11, %c0_12, %c0_13] : memref<4x144x256xf32, #tpu.memory_space<vmem>>, vector<4x16x256xf32>
    tpu.vector_store %arg6[%c0_11, %c0_12, %c0_13], %19 {strides = array<i32>} : memref<4x144x256xf32, #tpu.memory_space<vmem>>, vector<4x16x256xf32>,
    %c16_i32 = arith.constant 16 : i32
    %21 = tpu.dynamic_rotate %12 by %c16_i32 dim 1 : vector<64x256xf32>, i32 -> vector<64x256xf32>
    %22 = vector.shape_cast %21 : vector<64x256xf32> to vector<4x16x256xf32>
    %c1 = arith.constant 1 : index
    %c0_14 = arith.constant 0 : index
    %c0_15 = arith.constant 0 : index
    %23 = vector.load %arg4[%c1, %c0_14, %c0_15] : memref<9x16x256xf32, #tpu.memory_space<vmem>>, vector<1x16x256xf32>
    %24 = vector.shape_cast %23 : vector<1x16x256xf32> to vector<16x256xf32>
    %25 = vector.shape_cast %24 : vector<16x256xf32> to vector<1x16x256xf32>
    %26 = vector.broadcast %25 : vector<1x16x256xf32> to vector<4x16x256xf32>
    %27 = arith.mulf %22, %26 : vector<4x16x256xf32>
    %c0_16 = arith.constant 0 : index
    %c16_17 = arith.constant 16 : index
    %c0_18 = arith.constant 0 : index
    %28 = vector.load %arg6[%c0_16, %c16_17, %c0_18] : memref<4x144x256xf32, #tpu.memory_space<vmem>>, vector<4x16x256xf32>
    tpu.vector_store %arg6[%c0_16, %c16_17, %c0_18], %27 {strides = array<i32>} : memref<4x144x256xf32, #tpu.memory_space<vmem>>, vector<4x16x256xf32>,
    %c15_i32 = arith.constant 15 : i32
    %29 = tpu.dynamic_rotate %12 by %c15_i32 dim 1 : vector<64x256xf32>, i32 -> vector<64x256xf32>
    %30 = vector.shape_cast %29 : vector<64x256xf32> to vector<4x16x256xf32>
    %c2 = arith.constant 2 : index
    %c0_19 = arith.constant 0 : index
    %c0_20 = arith.constant 0 : index
    %31 = vector.load %arg4[%c2, %c0_19, %c0_20] : memref<9x16x256xf32, #tpu.memory_space<vmem>>, vector<1x16x256xf32>
    %32 = vector.shape_cast %31 : vector<1x16x256xf32> to vector<16x256xf32>
    %33 = vector.shape_cast %32 : vector<16x256xf32> to vector<1x16x256xf32>
    %34 = vector.broadcast %33 : vector<1x16x256xf32> to vector<4x16x256xf32>
    %35 = arith.mulf %30, %34 : vector<4x16x256xf32>
    %c0_21 = arith.constant 0 : index
    %c32 = arith.constant 32 : index
    %c0_22 = arith.constant 0 : index
    %36 = vector.load %arg6[%c0_21, %c32, %c0_22] : memref<4x144x256xf32, #tpu.memory_space<vmem>>, vector<4x16x256xf32>
    tpu.vector_store %arg6[%c0_21, %c32, %c0_22], %35 {strides = array<i32>} : memref<4x144x256xf32, #tpu.memory_space<vmem>>, vector<4x16x256xf32>,
    %c1_i32 = arith.constant 1 : i32
    %37 = tpu.dynamic_rotate %12 by %c1_i32 dim 1 : vector<64x256xf32>, i32 -> vector<64x256xf32>
    %38 = vector.shape_cast %37 : vector<64x256xf32> to vector<4x16x256xf32>
    %c3 = arith.constant 3 : index
    %c0_23 = arith.constant 0 : index
    %c0_24 = arith.constant 0 : index
    %39 = vector.load %arg4[%c3, %c0_23, %c0_24] : memref<9x16x256xf32, #tpu.memory_space<vmem>>, vector<1x16x256xf32>
    %40 = vector.shape_cast %39 : vector<1x16x256xf32> to vector<16x256xf32>
    %41 = vector.shape_cast %40 : vector<16x256xf32> to vector<1x16x256xf32>
    %42 = vector.broadcast %41 : vector<1x16x256xf32> to vector<4x16x256xf32>
    %43 = arith.mulf %38, %42 : vector<4x16x256xf32>
    %c0_25 = arith.constant 0 : index
    %c48 = arith.constant 48 : index
    %c0_26 = arith.constant 0 : index
    %44 = vector.load %arg6[%c0_25, %c48, %c0_26] : memref<4x144x256xf32, #tpu.memory_space<vmem>>, vector<4x16x256xf32>
    tpu.vector_store %arg6[%c0_25, %c48, %c0_26], %43 {strides = array<i32>} : memref<4x144x256xf32, #tpu.memory_space<vmem>>, vector<4x16x256xf32>,
    %c0_27 = arith.constant 0 : index
    %c64 = arith.constant 64 : index
    %c0_28 = arith.constant 0 : index
    %45 = vector.load %arg6[%c0_27, %c64, %c0_28] : memref<4x144x256xf32, #tpu.memory_space<vmem>>, vector<4x16x256xf32>
    tpu.vector_store %arg6[%c0_27, %c64, %c0_28], %11 {strides = array<i32>} : memref<4x144x256xf32, #tpu.memory_space<vmem>>, vector<4x16x256xf32>,
    %c255_i32 = arith.constant 255 : i32
    %46 = tpu.dynamic_rotate %12 by %c255_i32 dim 1 : vector<64x256xf32>, i32 -> vector<64x256xf32>
    %47 = vector.shape_cast %46 : vector<64x256xf32> to vector<4x16x256xf32>
    %c5 = arith.constant 5 : index
    %c0_29 = arith.constant 0 : index
    %c0_30 = arith.constant 0 : index
    %48 = vector.load %arg4[%c5, %c0_29, %c0_30] : memref<9x16x256xf32, #tpu.memory_space<vmem>>, vector<1x16x256xf32>
    %49 = vector.shape_cast %48 : vector<1x16x256xf32> to vector<16x256xf32>
    %50 = vector.shape_cast %49 : vector<16x256xf32> to vector<1x16x256xf32>
    %51 = vector.broadcast %50 : vector<1x16x256xf32> to vector<4x16x256xf32>
    %52 = arith.mulf %47, %51 : vector<4x16x256xf32>
    %c0_31 = arith.constant 0 : index
    %c80 = arith.constant 80 : index
    %c0_32 = arith.constant 0 : index
    %53 = vector.load %arg6[%c0_31, %c80, %c0_32] : memref<4x144x256xf32, #tpu.memory_space<vmem>>, vector<4x16x256xf32>
    tpu.vector_store %arg6[%c0_31, %c80, %c0_32], %52 {strides = array<i32>} : memref<4x144x256xf32, #tpu.memory_space<vmem>>, vector<4x16x256xf32>,
    %c241_i32 = arith.constant 241 : i32
    %54 = tpu.dynamic_rotate %12 by %c241_i32 dim 1 : vector<64x256xf32>, i32 -> vector<64x256xf32>
    %55 = vector.shape_cast %54 : vector<64x256xf32> to vector<4x16x256xf32>
    %c6 = arith.constant 6 : index
    %c0_33 = arith.constant 0 : index
    %c0_34 = arith.constant 0 : index
    %56 = vector.load %arg4[%c6, %c0_33, %c0_34] : memref<9x16x256xf32, #tpu.memory_space<vmem>>, vector<1x16x256xf32>
    %57 = vector.shape_cast %56 : vector<1x16x256xf32> to vector<16x256xf32>
    %58 = vector.shape_cast %57 : vector<16x256xf32> to vector<1x16x256xf32>
    %59 = vector.broadcast %58 : vector<1x16x256xf32> to vector<4x16x256xf32>
    %60 = arith.mulf %55, %59 : vector<4x16x256xf32>
    %c0_35 = arith.constant 0 : index
    %c96 = arith.constant 96 : index
    %c0_36 = arith.constant 0 : index
    %61 = vector.load %arg6[%c0_35, %c96, %c0_36] : memref<4x144x256xf32, #tpu.memory_space<vmem>>, vector<4x16x256xf32>
    tpu.vector_store %arg6[%c0_35, %c96, %c0_36], %60 {strides = array<i32>} : memref<4x144x256xf32, #tpu.memory_space<vmem>>, vector<4x16x256xf32>,
    %c240_i32 = arith.constant 240 : i32
    %62 = tpu.dynamic_rotate %12 by %c240_i32 dim 1 : vector<64x256xf32>, i32 -> vector<64x256xf32>
    %63 = vector.shape_cast %62 : vector<64x256xf32> to vector<4x16x256xf32>
    %c7 = arith.constant 7 : index
    %c0_37 = arith.constant 0 : index
    %c0_38 = arith.constant 0 : index
    %64 = vector.load %arg4[%c7, %c0_37, %c0_38] : memref<9x16x256xf32, #tpu.memory_space<vmem>>, vector<1x16x256xf32>
    %65 = vector.shape_cast %64 : vector<1x16x256xf32> to vector<16x256xf32>
    %66 = vector.shape_cast %65 : vector<16x256xf32> to vector<1x16x256xf32>
    %67 = vector.broadcast %66 : vector<1x16x256xf32> to vector<4x16x256xf32>
    %68 = arith.mulf %63, %67 : vector<4x16x256xf32>
    %c0_39 = arith.constant 0 : index
    %c112 = arith.constant 112 : index
    %c0_40 = arith.constant 0 : index
    %69 = vector.load %arg6[%c0_39, %c112, %c0_40] : memref<4x144x256xf32, #tpu.memory_space<vmem>>, vector<4x16x256xf32>
    tpu.vector_store %arg6[%c0_39, %c112, %c0_40], %68 {strides = array<i32>} : memref<4x144x256xf32, #tpu.memory_space<vmem>>, vector<4x16x256xf32>,
    %c239_i32 = arith.constant 239 : i32
    %70 = tpu.dynamic_rotate %12 by %c239_i32 dim 1 : vector<64x256xf32>, i32 -> vector<64x256xf32>
    %71 = vector.shape_cast %70 : vector<64x256xf32> to vector<4x16x256xf32>
    %c8 = arith.constant 8 : index
    %c0_41 = arith.constant 0 : index
    %c0_42 = arith.constant 0 : index
    %72 = vector.load %arg4[%c8, %c0_41, %c0_42] : memref<9x16x256xf32, #tpu.memory_space<vmem>>, vector<1x16x256xf32>
    %73 = vector.shape_cast %72 : vector<1x16x256xf32> to vector<16x256xf32>
    %74 = vector.shape_cast %73 : vector<16x256xf32> to vector<1x16x256xf32>
    %75 = vector.broadcast %74 : vector<1x16x256xf32> to vector<4x16x256xf32>
    %76 = arith.mulf %71, %75 : vector<4x16x256xf32>
    %c0_43 = arith.constant 0 : index
    %c128 = arith.constant 128 : index
    %c0_44 = arith.constant 0 : index
    %77 = vector.load %arg6[%c0_43, %c128, %c0_44] : memref<4x144x256xf32, #tpu.memory_space<vmem>>, vector<4x16x256xf32>
    tpu.vector_store %arg6[%c0_43, %c128, %c0_44], %76 {strides = array<i32>} : memref<4x144x256xf32, #tpu.memory_space<vmem>>, vector<4x16x256xf32>,
    %c0_45 = arith.constant 0 : index
    %c0_46 = arith.constant 0 : index
    %78 = vector.load %arg3[%c0_45, %c0_46] : memref<16x144xf32, #tpu.memory_space<vmem>>, vector<16x144xf32>
    %c0_47 = arith.constant 0 : index
    %c0_48 = arith.constant 0 : index
    %c0_49 = arith.constant 0 : index
    %79 = vector.load %arg6[%c0_47, %c0_48, %c0_49] : memref<4x144x256xf32, #tpu.memory_space<vmem>>, vector<1x144x256xf32>
    %80 = vector.shape_cast %79 : vector<1x144x256xf32> to vector<144x256xf32>
    %cst_50 = arith.constant dense<0.000000e+00> : vector<16x256xf32>
    %81 = tpu.matmul %78, %80, %cst_50 {dimension_numbers = #tpu.dot_dimension_numbers<[1], [0], [0], [1], [0, 0, 1, 1], [], []>} : vector<16x144xf32>, vector<144x256xf32>, vector<16x256xf32> -> vector<16x256xf32>
    %c0_51 = arith.constant 0 : index
    %c16_52 = arith.constant 16 : index
    %c0_53 = arith.constant 0 : index
    %82 = vector.load %arg5[%c0_51, %c16_52, %c0_53] : memref<4x32x256xf32, #tpu.memory_space<vmem>>, vector<1x16x256xf32>
    %83 = vector.shape_cast %82 : vector<1x16x256xf32> to vector<16x256xf32>
    %84 = vector.shape_cast %81 : vector<16x256xf32> to vector<1x16x256xf32>
    tpu.vector_store %arg5[%c0_51, %c16_52, %c0_53], %84 {strides = array<i32>} : memref<4x32x256xf32, #tpu.memory_space<vmem>>, vector<1x16x256xf32>,
    %c1_54 = arith.constant 1 : index
    %c0_55 = arith.constant 0 : index
    %c0_56 = arith.constant 0 : index
    %85 = vector.load %arg6[%c1_54, %c0_55, %c0_56] : memref<4x144x256xf32, #tpu.memory_space<vmem>>, vector<1x144x256xf32>
    %86 = vector.shape_cast %85 : vector<1x144x256xf32> to vector<144x256xf32>
    %cst_57 = arith.constant dense<0.000000e+00> : vector<16x256xf32>
    %87 = tpu.matmul %78, %86, %cst_57 {dimension_numbers = #tpu.dot_dimension_numbers<[1], [0], [0], [1], [0, 0, 1, 1], [], []>} : vector<16x144xf32>, vector<144x256xf32>, vector<16x256xf32> -> vector<16x256xf32>
    %c1_58 = arith.constant 1 : index
    %c16_59 = arith.constant 16 : index
    %c0_60 = arith.constant 0 : index
    %88 = vector.load %arg5[%c1_58, %c16_59, %c0_60] : memref<4x32x256xf32, #tpu.memory_space<vmem>>, vector<1x16x256xf32>
    %89 = vector.shape_cast %88 : vector<1x16x256xf32> to vector<16x256xf32>
    %90 = vector.shape_cast %87 : vector<16x256xf32> to vector<1x16x256xf32>
    tpu.vector_store %arg5[%c1_58, %c16_59, %c0_60], %90 {strides = array<i32>} : memref<4x32x256xf32, #tpu.memory_space<vmem>>, vector<1x16x256xf32>,
    %c2_61 = arith.constant 2 : index
    %c0_62 = arith.constant 0 : index
    %c0_63 = arith.constant 0 : index
    %91 = vector.load %arg6[%c2_61, %c0_62, %c0_63] : memref<4x144x256xf32, #tpu.memory_space<vmem>>, vector<1x144x256xf32>
    %92 = vector.shape_cast %91 : vector<1x144x256xf32> to vector<144x256xf32>
    %cst_64 = arith.constant dense<0.000000e+00> : vector<16x256xf32>
    %93 = tpu.matmul %78, %92, %cst_64 {dimension_numbers = #tpu.dot_dimension_numbers<[1], [0], [0], [1], [0, 0, 1, 1], [], []>} : vector<16x144xf32>, vector<144x256xf32>, vector<16x256xf32> -> vector<16x256xf32>
    %c2_65 = arith.constant 2 : index
    %c16_66 = arith.constant 16 : index
    %c0_67 = arith.constant 0 : index
    %94 = vector.load %arg5[%c2_65, %c16_66, %c0_67] : memref<4x32x256xf32, #tpu.memory_space<vmem>>, vector<1x16x256xf32>
    %95 = vector.shape_cast %94 : vector<1x16x256xf32> to vector<16x256xf32>
    %96 = vector.shape_cast %93 : vector<16x256xf32> to vector<1x16x256xf32>
    tpu.vector_store %arg5[%c2_65, %c16_66, %c0_67], %96 {strides = array<i32>} : memref<4x32x256xf32, #tpu.memory_space<vmem>>, vector<1x16x256xf32>,
    %c3_68 = arith.constant 3 : index
    %c0_69 = arith.constant 0 : index
    %c0_70 = arith.constant 0 : index
    %97 = vector.load %arg6[%c3_68, %c0_69, %c0_70] : memref<4x144x256xf32, #tpu.memory_space<vmem>>, vector<1x144x256xf32>
    %98 = vector.shape_cast %97 : vector<1x144x256xf32> to vector<144x256xf32>
    %cst_71 = arith.constant dense<0.000000e+00> : vector<16x256xf32>
    %99 = tpu.matmul %78, %98, %cst_71 {dimension_numbers = #tpu.dot_dimension_numbers<[1], [0], [0], [1], [0, 0, 1, 1], [], []>} : vector<16x144xf32>, vector<144x256xf32>, vector<16x256xf32> -> vector<16x256xf32>
    %c3_72 = arith.constant 3 : index
    %c16_73 = arith.constant 16 : index
    %c0_74 = arith.constant 0 : index
    %100 = vector.load %arg5[%c3_72, %c16_73, %c0_74] : memref<4x32x256xf32, #tpu.memory_space<vmem>>, vector<1x16x256xf32>
    %101 = vector.shape_cast %100 : vector<1x16x256xf32> to vector<16x256xf32>
    %102 = vector.shape_cast %99 : vector<16x256xf32> to vector<1x16x256xf32>
    tpu.vector_store %arg5[%c3_72, %c16_73, %c0_74], %102 {strides = array<i32>} : memref<4x32x256xf32, #tpu.memory_space<vmem>>, vector<1x16x256xf32>,
    return
  }
  func.func @transform_0(%arg0: i32) -> (i32, i32, i32) {
    %c0_i32 = arith.constant 0 : i32
    %c0_i32_0 = arith.constant 0 : i32
    %c0_i32_1 = arith.constant 0 : i32
    return %arg0, %c0_i32, %c0_i32_0 : i32, i32, i32
  }
  func.func @transform_1(%arg0: i32) -> (i32, i32) {
    %c0_i32 = arith.constant 0 : i32
    %c0_i32_0 = arith.constant 0 : i32
    %c0_i32_1 = arith.constant 0 : i32
    return %c0_i32, %c0_i32_0 : i32, i32
  }
  func.func @transform_2(%arg0: i32) -> (i32, i32) {
    %c0_i32 = arith.constant 0 : i32
    %c0_i32_0 = arith.constant 0 : i32
    %c0_i32_1 = arith.constant 0 : i32
    return %c0_i32, %c0_i32_0 : i32, i32
  }
  func.func @transform_3(%arg0: i32) -> (i32, i32, i32) {
    %c0_i32 = arith.constant 0 : i32
    %c0_i32_0 = arith.constant 0 : i32
    %c0_i32_1 = arith.constant 0 : i32
    %c0_i32_2 = arith.constant 0 : i32
    return %c0_i32, %c0_i32_0, %c0_i32_1 : i32, i32, i32
  }
  func.func @transform_4(%arg0: i32) -> (i32, i32, i32) {
    %c0_i32 = arith.constant 0 : i32
    %c0_i32_0 = arith.constant 0 : i32
    %c0_i32_1 = arith.constant 0 : i32
    return %arg0, %c0_i32, %c0_i32_0 : i32, i32, i32
  }
}

</mosaic_0001>

<llo_original>
// kernel: tpu_custom_call.1
$region0: #{tpu_custom_call.1}
  #allocation0 [shape = 'u32[]', space=smem, size = 0x4, offset = 0x4, fixed_abs, tag = 'smem constant byte address 0x4 - core index']
  #allocation1 [shape = 'u32[144,128]{1,0:T(1,128)}', space=vmem, size = 0x12000, scoped, tag = 'internal scratch']
  #allocation2 [shape = 'f32[4,144,256]{2,1,0:T(8,128)}', space=vmem, size = 0x90000, scoped, tag = 'scratch operand']
  %s0 = inlined_call_operand.hbm [shape: f32[8,16,256], index: 0, kind: input, shape index: {}]
  %s1 = inlined_call_operand.vmem [shape: f32[32,1], index: 1, kind: input, shape index: {}]
  %s2 = inlined_call_operand.vmem [shape: f32[16,144], index: 2, kind: input, shape index: {}]
  %s3 = inlined_call_operand.hbm [shape: f32[9,16,256], index: 3, kind: input, shape index: {}]
  %s4 = inlined_call_operand.hbm [shape: f32[8,32,256], index: 4, kind: output, shape index: {}]
  %s5 = sld [smem:[#allocation0]]
  $region57: #{tpu_custom_call.1} parent=0
    _
  %s7 = ssub.s32 1, %s5
  %s8 = scalar_select 0, %s7, %s5
  $region1: #{tpu_custom_call.1} parent=0
    #allocation3 [shape = 'u8[131072]{0}', space=vmem, size = 0x20000, scoped, tag = 'input window, operand 0']
    #allocation4 [shape = 's32[2]{0}', space=sflag, size = 0x8, scoped, tag = 'scoped memory for tpu_custom_call.1']
    #allocation5 [shape = 's32[2]{0}', space=sflag, size = 0x8, scoped, tag = 'scoped memory for tpu_custom_call.1']
    #allocation6 [shape = 'u8[147456]{0}', space=vmem, size = 0x24000, scoped, tag = 'input window, operand 3, single buffered']
    #allocation7 [shape = 's32[1]{0}', space=sflag, size = 0x4, scoped, tag = 'scoped memory for tpu_custom_call.1']
    #allocation8 [shape = 'u8[262144]{0}', space=vmem, size = 0x40000, scoped, tag = 'output window, operand 0']
    %9 = vsyncpa [#allocation4], 0
    %s10 = scalar_lea.sflag [#allocation4], 1
    %11 = vsyncpa %s10, 0
    %12 = vsyncpa [#allocation7], 0
    %13 = vsyncpa [#allocation5], 0
    %s14 = scalar_lea.sflag [#allocation5], 1
    %15 = vsyncpa %s14, 0
    loop: start=0, step=1, limit=4
    $region2: #{tpu_custom_call.1} parent=1 // loop_pre_header
      _
    $region3: #{tpu_custom_call.1} parent=1 // loop_header
      %s17 = sphi 0, %s21
      %p18 = scmp.ge.s32.totalorder %s17, 4
      %s27 = sphi 0, %s29
      %s30 = sphi 0, %s27
      %s31 = sphi 0, %s30
      %s47 = sphi 0, %s31
      %s51 = sphi 0, %s51
      %s53 = sphi 0, %s51
      %s54 = sphi 0, %s53
      %s68 = sphi 0, %s54
      %s72 = sphi 0, %s72
      %s74 = sphi 0, %s72
      %s75 = sphi 0, %s74
      %s89 = sphi 0, %s75
      %s93 = sphi 0, %s93
      %s95 = sphi 0, %s93
      %s96 = sphi 0, %s95
      %s110 = sphi 0, %s96
      %s116 = sphi 0, %s118
      %s119 = sphi 0, %s116
      %s120 = sphi 0, %s119
      %s136 = sphi 0, %s120
    $region4: #{tpu_custom_call.1} parent=1 // loop_header_branch
      %20 = sbr.rel (%p18) target = $region8
    $region5: #{tpu_custom_call.1} parent=1 // loop_body
      %s22 = ssub.s32 %s17, 1
      %s23 = ssub.s32 %s17, 2
      %s24 = sadd.s32 %s17, 1
      %s25 = ssub.s32 %s17, %s24
      %p26 = scmp.eq.s32.totalorder %s25, 0
      %s28 = sadd.s32 %s27, 1
      %s29 = scalar_select %p26, %s27, %s28
      %p32 = pneg %p26
      %p33 = scmp.eq.s32.totalorder %s17, 1
      %p34 = por %p32, %p33
      %p35 = scmp.ne.s32.totalorder %s27, %s30
      %p36 = scmp.eq.s32.totalorder %s17, 0
      %p37 = por %p35, %p36
      %p38 = scmp.ne.s32.totalorder %s27, %s30
      %p39 = scmp.eq.s32.totalorder %s22, 1
      %p40 = por %p38, %p39
      %p41 = scmp.ne.s32.totalorder %s30, %s31
      %p42 = scmp.eq.s32.totalorder %s22, 0
      %p43 = por %p41, %p42
      %p44 = scmp.ne.s32.totalorder %s30, %s31
      %p45 = scmp.eq.s32.totalorder %s23, 1
      %p46 = por %p44, %p45
      %p48 = scmp.ne.s32.totalorder %s31, %s47
      %p49 = scmp.eq.s32.totalorder %s23, 0
      %p50 = por %p48, %p49
      %s52 = sadd.s32 %s51, 1
      %p55 = scmp.eq.s32.totalorder %s17, 1
      %p56 = scmp.ne.s32.totalorder %s51, %s53
      %p57 = scmp.eq.s32.totalorder %s17, 0
      %p58 = por %p56, %p57
      %p59 = scmp.ne.s32.totalorder %s51, %s53
      %p60 = scmp.eq.s32.totalorder %s22, 1
      %p61 = por %p59, %p60
      %p62 = scmp.ne.s32.totalorder %s53, %s54
      %p63 = scmp.eq.s32.totalorder %s22, 0
      %p64 = por %p62, %p63
      %p65 = scmp.ne.s32.totalorder %s53, %s54
      %p66 = scmp.eq.s32.totalorder %s23, 1
      %p67 = por %p65, %p66
      %p69 = scmp.ne.s32.totalorder %s54, %s68
      %p70 = scmp.eq.s32.totalorder %s23, 0
      %p71 = por %p69, %p70
      %s73 = sadd.s32 %s72, 1
      %p76 = scmp.eq.s32.totalorder %s17, 1
      %p77 = scmp.ne.s32.totalorder %s72, %s74
      %p78 = scmp.eq.s32.totalorder %s17, 0
      %p79 = por %p77, %p78
      %p80 = scmp.ne.s32.totalorder %s72, %s74
      %p81 = scmp.eq.s32.totalorder %s22, 1
      %p82 = por %p80, %p81
      %p83 = scmp.ne.s32.totalorder %s74, %s75
      %p84 = scmp.eq.s32.totalorder %s22, 0
      %p85 = por %p83, %p84
      %p86 = scmp.ne.s32.totalorder %s74, %s75
      %p87 = scmp.eq.s32.totalorder %s23, 1
      %p88 = por %p86, %p87
      %p90 = scmp.ne.s32.totalorder %s75, %s89
      %p91 = scmp.eq.s32.totalorder %s23, 0
      %p92 = por %p90, %p91
      %s94 = sadd.s32 %s93, 1
      %p97 = scmp.eq.s32.totalorder %s17, 1
      %p98 = scmp.ne.s32.totalorder %s93, %s95
      %p99 = scmp.eq.s32.totalorder %s17, 0
      %p100 = por %p98, %p99
      %p101 = scmp.ne.s32.totalorder %s93, %s95
      %p102 = scmp.eq.s32.totalorder %s22, 1
      %p103 = por %p101, %p102
      %p104 = scmp.ne.s32.totalorder %s95, %s96
      %p105 = scmp.eq.s32.totalorder %s22, 0
      %p106 = por %p104, %p105
      %p107 = scmp.ne.s32.totalorder %s95, %s96
      %p108 = scmp.eq.s32.totalorder %s23, 1
      %p109 = por %p107, %p108
      %p111 = scmp.ne.s32.totalorder %s96, %s110
      %p112 = scmp.eq.s32.totalorder %s23, 0
      %p113 = por %p111, %p112
      %s114 = ssub.s32 %s17, %s24
      %p115 = scmp.eq.s32.totalorder %s114, 0
      %s117 = sadd.s32 %s116, 1
      %s118 = scalar_select %p115, %s116, %s117
      %p121 = pneg %p115
      %p122 = scmp.eq.s32.totalorder %s17, 1
      %p123 = por %p121, %p122
      %p124 = scmp.ne.s32.totalorder %s116, %s119
      %p125 = scmp.eq.s32.totalorder %s17, 0
      %p126 = por %p124, %p125
      %p127 = scmp.ne.s32.totalorder %s116, %s119
      %p128 = scmp.eq.s32.totalorder %s22, 1
      %p129 = por %p127, %p128
      %p130 = scmp.ne.s32.totalorder %s119, %s120
      %p131 = scmp.eq.s32.totalorder %s22, 0
      %p132 = por %p130, %p131
      %p133 = scmp.ne.s32.totalorder %s119, %s120
      %p134 = scmp.eq.s32.totalorder %s23, 1
      %p135 = por %p133, %p134
      %p137 = scmp.ne.s32.totalorder %s120, %s136
      %p138 = scmp.eq.s32.totalorder %s23, 0
      %p139 = por %p137, %p138
      %p140 = scmp.le.s32.totalorder 1, %s17
      %p141 = scmp.lt.s32.totalorder %s17, 3
      %p142 = pnand %p140, %p141
      %p143 = pneg %p142
      // Predicated region
      $region9: #{tpu_custom_call.1} parent=5 // pred_check
        _
      $region10: #{tpu_custom_call.1} parent=5 // pred_check_branch
        %145 = sbr.rel (%p142) target = $region12
      $region11: #{tpu_custom_call.1} parent=5 // pred_region
        %s146 = ssub.s32 %s17, 1
        // Predicated region
        $region13: #{tpu_custom_call.1} parent=11 // pred_check
          %p147 = pneg %p64
        $region14: #{tpu_custom_call.1} parent=11 // pred_check_branch
          %149 = sbr.rel (%p147) target = $region16
        $region15: #{tpu_custom_call.1} parent=11 // pred_region
          _
        $region16: #{tpu_custom_call.1} parent=11 // pred_fallthru
          _
        // Predicated region
        $region17: #{tpu_custom_call.1} parent=11 // pred_check
          %p150 = pneg %p85
        $region18: #{tpu_custom_call.1} parent=11 // pred_check_branch
          %152 = sbr.rel (%p150) target = $region20
        $region19: #{tpu_custom_call.1} parent=11 // pred_region
          _
        $region20: #{tpu_custom_call.1} parent=11 // pred_fallthru
          _
        // Predicated region
        $region21: #{tpu_custom_call.1} parent=11 // pred_check
          %p153 = pneg %p106
        $region22: #{tpu_custom_call.1} parent=11 // pred_check_branch
          %155 = sbr.rel (%p153) target = $region24
        $region23: #{tpu_custom_call.1} parent=11 // pred_region
          %s157 = ssub.s32 4608, 4608
          %158 = vsyncadd [#allocation7], %s157
          %s159 = sshll.u32 [#allocation6], 4
          %s160 = int_to_ptr.vmem [resolvable:$true] %s159
          %165 = dma.hbm_to_vmem [thread:$0]  %s3, 4608, %s160, [#allocation7], 256, 256, 16
        $region24: #{tpu_custom_call.1} parent=11 // pred_fallthru
          _
      $region12: #{tpu_custom_call.1} parent=5 // pred_fallthru
        _
      %p166 = scmp.lt.s32.totalorder %s17, 2
      // Predicated region
      $region25: #{tpu_custom_call.1} parent=5 // pred_check
        %p167 = pneg %p166
      $region26: #{tpu_custom_call.1} parent=5 // pred_check_branch
        %169 = sbr.rel (%p167) target = $region28
      $region27: #{tpu_custom_call.1} parent=5 // pred_region
        // Predicated region
        $region29: #{tpu_custom_call.1} parent=27 // pred_check
          %p170 = pneg %p37
        $region30: #{tpu_custom_call.1} parent=27 // pred_check_branch
          %172 = sbr.rel (%p170) target = $region32
        $region31: #{tpu_custom_call.1} parent=27 // pred_region
          %s173 = sand.u32 %s27, 1
          %s174 = scalar_lea.sflag [#allocation4], %s173
          %s175 = sand.u32 %s27, 1
          %s176 = smul.addr %s175, 128
          %s177 = scalar_lea.vmem [#allocation3], %s176
          %s178 = smul.u32 4, %s17
          %s180 = ssub.s32 2048, 2048
          %181 = vsyncadd %s174, %s180
          %s182 = smul.addr %s178, 4
          %s183 = smul.addr %s182, 128
          %s184 = scalar_lea.hbm %s0, %s183
          %s185 = sshll.u32 %s177, 4
          %s186 = int_to_ptr.vmem [resolvable:$true] %s185
          %191 = dma.hbm_to_vmem [thread:$0]  %s184, 2048, %s186, %s174, 256, 256, 16
        $region32: #{tpu_custom_call.1} parent=27 // pred_fallthru
          _
      $region28: #{tpu_custom_call.1} parent=5 // pred_fallthru
        _
      %p192 = scmp.le.s32.totalorder 1, %s17
      %p193 = scmp.lt.s32.totalorder %s17, 3
      %p194 = pnand %p192, %p193
      %p195 = pneg %p194
      // Predicated region
      $region33: #{tpu_custom_call.1} parent=5 // pred_check
        _
      $region34: #{tpu_custom_call.1} parent=5 // pred_check_branch
        %197 = sbr.rel (%p194) target = $region36
      $region35: #{tpu_custom_call.1} parent=5 // pred_region
        %s198 = ssub.s32 %s17, 1
        %s199 = sand.u32 %s30, 1
        %s200 = scalar_lea.sflag [#allocation4], %s199
        %s201 = sand.u32 %s30, 1
        %s202 = smul.addr %s201, 128
        %s203 = scalar_lea.vmem [#allocation3], %s202
        // Predicated region
        $region37: #{tpu_custom_call.1} parent=35 // pred_check
          %p204 = pneg %p43
        $region38: #{tpu_custom_call.1} parent=35 // pred_check_branch
          %206 = sbr.rel (%p204) target = $region40
        $region39: #{tpu_custom_call.1} parent=35 // pred_region
          %207 = dma.done %s200, 2048
        $region40: #{tpu_custom_call.1} parent=35 // pred_fallthru
          _
        // Predicated region
        $region41: #{tpu_custom_call.1} parent=35 // pred_check
          %p208 = pneg %p106
        $region42: #{tpu_custom_call.1} parent=35 // pred_check_branch
          %210 = sbr.rel (%p208) target = $region44
        $region43: #{tpu_custom_call.1} parent=35 // pred_region
          %211 = dma.done [#allocation7], 4608
        $region44: #{tpu_custom_call.1} parent=35 // pred_fallthru
          _
        %s212 = sand.u32 %s30, 1
        %s213 = scalar_lea.sflag [#allocation4], %s212
        %s214 = sand.u32 %s30, 1
        %s215 = smul.addr %s214, 128
        %s216 = scalar_lea.vmem [#allocation3], %s215
        %p217 = pneg %p43
        %p218 = pneg %p40
        %p219 = pneg %p64
        %p220 = pneg %p61
        %p221 = pneg %p85
        %p222 = pneg %p82
        %p223 = pneg %p106
        %p224 = pneg %p103
        %p225 = pneg %p132
        %p226 = pneg %p129
        %s227 = sand.u32 %s119, 1
        %s228 = scalar_lea.sflag [#allocation5], %s227
        %s229 = sand.u32 %s119, 1
        %s230 = smul.addr %s229, 256
        %s231 = scalar_lea.vmem [#allocation8], %s230
        %s232 = smul.u32 4, %s22
        %s233 = smul.u32 4, %s22
        %v234 = vld [vmem:[%s203] sm:$0xff]
        %v235 = vld [vmem:[%s203 + $0x8] sm:$0xff]
        %v236 = vld [vmem:[%s203 + $0x10] sm:$0xff]
        %v237 = vld [vmem:[%s203 + $0x18] sm:$0xff]
        %v238 = vld [vmem:[%s203 + $0x20] sm:$0xff]
        %v239 = vld [vmem:[%s203 + $0x28] sm:$0xff]
        %v240 = vld [vmem:[%s203 + $0x30] sm:$0xff]
        %v241 = vld [vmem:[%s203 + $0x38] sm:$0xff]
        %v242 = vld [vmem:[%s203 + $0x40] sm:$0xff]
        %v243 = vld [vmem:[%s203 + $0x48] sm:$0xff]
        %v244 = vld [vmem:[%s203 + $0x50] sm:$0xff]
        %v245 = vld [vmem:[%s203 + $0x58] sm:$0xff]
        %v246 = vld [vmem:[%s203 + $0x60] sm:$0xff]
        %v247 = vld [vmem:[%s203 + $0x68] sm:$0xff]
        %v248 = vld [vmem:[%s203 + $0x70] sm:$0xff]
        %v249 = vld [vmem:[%s203 + $0x78] sm:$0xff]
        %250 = vst [vmem:[%s231] sm:$0xff] %v234
        %251 = vst [vmem:[%s231 + $0x8] sm:$0xff] %v235
        %252 = vst [vmem:[%s231 + $0x10] sm:$0xff] %v236
        %253 = vst [vmem:[%s231 + $0x18] sm:$0xff] %v237
        %254 = vst [vmem:[%s231 + $0x40] sm:$0xff] %v238
        %255 = vst [vmem:[%s231 + $0x48] sm:$0xff] %v239
        %256 = vst [vmem:[%s231 + $0x50] sm:$0xff] %v240
        %257 = vst [vmem:[%s231 + $0x58] sm:$0xff] %v241
        %258 = vst [vmem:[%s231 + $0x80] sm:$0xff] %v242
        %259 = vst [vmem:[%s231 + $0x88] sm:$0xff] %v243
        %260 = vst [vmem:[%s231 + $0x90] sm:$0xff] %v244
        %261 = vst [vmem:[%s231 + $0x98] sm:$0xff] %v245
        %262 = vst [vmem:[%s231 + $0xc0] sm:$0xff] %v246
        %263 = vst [vmem:[%s231 + $0xc8] sm:$0xff] %v247
        %264 = vst [vmem:[%s231 + $0xd0] sm:$0xff] %v248
        %265 = vst [vmem:[%s231 + $0xd8] sm:$0xff] %v249
        %v266 = vld [vmem:[%s1] sm:$0xff]
        %v267 = vld [vmem:[%s1 + $0x8] sm:$0xff]
        %v268 = vld [vmem:[%s1 + $0x10] sm:$0xff]
        %v269 = vld [vmem:[%s1 + $0x18] sm:$0xff]
        %271 = vset.pattern.permute.xlu0 0
        %272 = vperm.xlu0 %271, %v266
        %v273 = vpop.permute.xlu0 %272
        %276 = vset.pattern.permute.xlu0 0
        %277 = vperm.xlu0 %276, %v267
        %v278 = vpop.permute.xlu0 %277
        %v280 = vmul.f32 %v234, %v273
        %v281 = vmul.f32 %v235, %v273
        %v282 = vmul.f32 %v236, %v278
        %v283 = vmul.f32 %v237, %v278
        %v284 = vmul.f32 %v238, %v273
        %v285 = vmul.f32 %v239, %v273
        %v286 = vmul.f32 %v240, %v278
        %v287 = vmul.f32 %v241, %v278
        %v288 = vmul.f32 %v242, %v273
        %v289 = vmul.f32 %v243, %v273
        %v290 = vmul.f32 %v244, %v278
        %v291 = vmul.f32 %v245, %v278
        %v292 = vmul.f32 %v246, %v273
        %v293 = vmul.f32 %v247, %v273
        %v294 = vmul.f32 %v248, %v278
        %v295 = vmul.f32 %v249, %v278
        %297 = vset.pattern.permute.xlu0 0
        %298 = vperm.xlu0 %297, %v268
        %v299 = vpop.permute.xlu0 %298
        %302 = vset.pattern.permute.xlu0 0
        %303 = vperm.xlu0 %302, %v269
        %v304 = vpop.permute.xlu0 %303
        %v306 = vadd.f32 %v280, %v299
        %v307 = vadd.f32 %v281, %v299
        %v308 = vadd.f32 %v282, %v304
        %v309 = vadd.f32 %v283, %v304
        %v310 = vadd.f32 %v284, %v299
        %v311 = vadd.f32 %v285, %v299
        %v312 = vadd.f32 %v286, %v304
        %v313 = vadd.f32 %v287, %v304
        %v314 = vadd.f32 %v288, %v299
        %v315 = vadd.f32 %v289, %v299
        %v316 = vadd.f32 %v290, %v304
        %v317 = vadd.f32 %v291, %v304
        %v318 = vadd.f32 %v292, %v299
        %v319 = vadd.f32 %v293, %v299
        %v320 = vadd.f32 %v294, %v304
        %v321 = vadd.f32 %v295, %v304
        %v322 = vmax.f32 %v306, 0.0
        %v323 = vmax.f32 %v307, 0.0
        %v324 = vmax.f32 %v308, 0.0
        %v325 = vmax.f32 %v309, 0.0
        %v326 = vmax.f32 %v310, 0.0
        %v327 = vmax.f32 %v311, 0.0
        %v328 = vmax.f32 %v312, 0.0
        %v329 = vmax.f32 %v313, 0.0
        %v330 = vmax.f32 %v314, 0.0
        %v331 = vmax.f32 %v315, 0.0
        %v332 = vmax.f32 %v316, 0.0
        %v333 = vmax.f32 %v317, 0.0
        %v334 = vmax.f32 %v318, 0.0
        %v335 = vmax.f32 %v319, 0.0
        %v336 = vmax.f32 %v320, 0.0
        %v337 = vmax.f32 %v321, 0.0
        %338 = vrot.lane.b32.xlu0 %v322, 17
        %v339 = vpop.permute.xlu0 %338
        %340 = vrot.lane.b32.xlu0 %v324, 17
        %v341 = vpop.permute.xlu0 %340
        %342 = vrot.lane.b32.xlu0 %v326, 17
        %v343 = vpop.permute.xlu0 %342
        %344 = vrot.lane.b32.xlu0 %v328, 17
        %v345 = vpop.permute.xlu0 %344
        %346 = vrot.lane.b32.xlu0 %v330, 17
        %v347 = vpop.permute.xlu0 %346
        %348 = vrot.lane.b32.xlu0 %v332, 17
        %v349 = vpop.permute.xlu0 %348
        %350 = vrot.lane.b32.xlu0 %v334, 17
        %v351 = vpop.permute.xlu0 %350
        %352 = vrot.lane.b32.xlu0 %v336, 17
        %v353 = vpop.permute.xlu0 %352
        %354 = vrot.lane.b32.xlu0 %v323, 17
        %v355 = vpop.permute.xlu0 %354
        %356 = vrot.lane.b32.xlu0 %v325, 17
        %v357 = vpop.permute.xlu0 %356
        %358 = vrot.lane.b32.xlu0 %v327, 17
        %v359 = vpop.permute.xlu0 %358
        %360 = vrot.lane.b32.xlu0 %v329, 17
        %v361 = vpop.permute.xlu0 %360
        %362 = vrot.lane.b32.xlu0 %v331, 17
        %v363 = vpop.permute.xlu0 %362
        %364 = vrot.lane.b32.xlu0 %v333, 17
        %v365 = vpop.permute.xlu0 %364
        %366 = vrot.lane.b32.xlu0 %v335, 17
        %v367 = vpop.permute.xlu0 %366
        %368 = vrot.lane.b32.xlu0 %v337, 17
        %v369 = vpop.permute.xlu0 %368
        %v370 = vlaneseq
        %v371 = vand.u32 %v370, 127
        %vm372 = vcmp.lt.s32.totalorder %v371, 17
        %v373 = vsel %vm372, %v339, %v355
        %v374 = vsel %vm372, %v341, %v357
        %v375 = vsel %vm372, %v343, %v359
        %v376 = vsel %vm372, %v345, %v361
        %v377 = vsel %vm372, %v347, %v363
        %v378 = vsel %vm372, %v349, %v365
        %v379 = vsel %vm372, %v351, %v367
        %v380 = vsel %vm372, %v353, %v369
        %v381 = vsel %vm372, %v355, %v339
        %v382 = vsel %vm372, %v357, %v341
        %v383 = vsel %vm372, %v359, %v343
        %v384 = vsel %vm372, %v361, %v345
        %v385 = vsel %vm372, %v363, %v347
        %v386 = vsel %vm372, %v365, %v349
        %v387 = vsel %vm372, %v367, %v351
        %v388 = vsel %vm372, %v369, %v353
        %v389 = vld [vmem:[#allocation6] sm:$0xff]
        %v390 = vld [vmem:[#allocation6 + $0x8] sm:$0xff]
        %v391 = vld [vmem:[#allocation6 + $0x10] sm:$0xff]
        %v392 = vld [vmem:[#allocation6 + $0x18] sm:$0xff]
        %v393 = vmul.f32 %v381, %v389
        %v394 = vmul.f32 %v373, %v390
        %v395 = vmul.f32 %v382, %v391
        %v396 = vmul.f32 %v374, %v392
        %v397 = vmul.f32 %v383, %v389
        %v398 = vmul.f32 %v375, %v390
        %v399 = vmul.f32 %v384, %v391
        %v400 = vmul.f32 %v376, %v392
        %v401 = vmul.f32 %v385, %v389
        %v402 = vmul.f32 %v377, %v390
        %v403 = vmul.f32 %v386, %v391
        %v404 = vmul.f32 %v378, %v392
        %v405 = vmul.f32 %v387, %v389
        %v406 = vmul.f32 %v379, %v390
        %v407 = vmul.f32 %v388, %v391
        %v408 = vmul.f32 %v380, %v392
        %409 = vst [vmem:[#allocation2] sm:$0xff] %v393
        %410 = vst [vmem:[#allocation2 + $0x8] sm:$0xff] %v394
        %411 = vst [vmem:[#allocation2 + $0x10] sm:$0xff] %v395
        %412 = vst [vmem:[#allocation2 + $0x18] sm:$0xff] %v396
        %413 = vst [vmem:[#allocation2 + $0x120] sm:$0xff] %v397
        %414 = vst [vmem:[#allocation2 + $0x128] sm:$0xff] %v398
        %415 = vst [vmem:[#allocation2 + $0x130] sm:$0xff] %v399
        %416 = vst [vmem:[#allocation2 + $0x138] sm:$0xff] %v400
        %417 = vst [vmem:[#allocation2 + $0x240] sm:$0xff] %v401
        %418 = vst [vmem:[#allocation2 + $0x248] sm:$0xff] %v402
        %419 = vst [vmem:[#allocation2 + $0x250] sm:$0xff] %v403
        %420 = vst [vmem:[#allocation2 + $0x258] sm:$0xff] %v404
        %421 = vst [vmem:[#allocation2 + $0x360] sm:$0xff] %v405
        %422 = vst [vmem:[#allocation2 + $0x368] sm:$0xff] %v406
        %423 = vst [vmem:[#allocation2 + $0x370] sm:$0xff] %v407
        %424 = vst [vmem:[#allocation2 + $0x378] sm:$0xff] %v408
        %425 = vrot.lane.b32.xlu0 %v322, 16
        %v426 = vpop.permute.xlu0 %425
        %427 = vrot.lane.b32.xlu0 %v324, 16
        %v428 = vpop.permute.xlu0 %427
        %429 = vrot.lane.b32.xlu0 %v326, 16
        %v430 = vpop.permute.xlu0 %429
        %431 = vrot.lane.b32.xlu0 %v328, 16
        %v432 = vpop.permute.xlu0 %431
        %433 = vrot.lane.b32.xlu0 %v330, 16
        %v434 = vpop.permute.xlu0 %433
        %435 = vrot.lane.b32.xlu0 %v332, 16
        %v436 = vpop.permute.xlu0 %435
        %437 = vrot.lane.b32.xlu0 %v334, 16
        %v438 = vpop.permute.xlu0 %437
        %439 = vrot.lane.b32.xlu0 %v336, 16
        %v440 = vpop.permute.xlu0 %439
        %441 = vrot.lane.b32.xlu0 %v323, 16
        %v442 = vpop.permute.xlu0 %441
        %443 = vrot.lane.b32.xlu0 %v325, 16
        %v444 = vpop.permute.xlu0 %443
        %445 = vrot.lane.b32.xlu0 %v327, 16
        %v446 = vpop.permute.xlu0 %445
        %447 = vrot.lane.b32.xlu0 %v329, 16
        %v448 = vpop.permute.xlu0 %447
        %449 = vrot.lane.b32.xlu0 %v331, 16
        %v450 = vpop.permute.xlu0 %449
        %451 = vrot.lane.b32.xlu0 %v333, 16
        %v452 = vpop.permute.xlu0 %451
        %453 = vrot.lane.b32.xlu0 %v335, 16
        %v454 = vpop.permute.xlu0 %453
        %455 = vrot.lane.b32.xlu0 %v337, 16
        %v456 = vpop.permute.xlu0 %455
        %vm457 = vcmp.lt.s32.totalorder %v371, 16
        %v458 = vsel %vm457, %v426, %v442
        %v459 = vsel %vm457, %v428, %v444
        %v460 = vsel %vm457, %v430, %v446
        %v461 = vsel %vm457, %v432, %v448
        %v462 = vsel %vm457, %v434, %v450
        %v463 = vsel %vm457, %v436, %v452
        %v464 = vsel %vm457, %v438, %v454
        %v465 = vsel %vm457, %v440, %v456
        %v466 = vsel %vm457, %v442, %v426
        %v467 = vsel %vm457, %v444, %v428
        %v468 = vsel %vm457, %v446, %v430
        %v469 = vsel %vm457, %v448, %v432
        %v470 = vsel %vm457, %v450, %v434
        %v471 = vsel %vm457, %v452, %v436
        %v472 = vsel %vm457, %v454, %v438
        %v473 = vsel %vm457, %v456, %v440
        %s474 = scalar_lea.vmem [#allocation6], 32
        %v475 = vld [vmem:[%s474] sm:$0xff]
        %v476 = vld [vmem:[%s474 + $0x8] sm:$0xff]
        %v477 = vld [vmem:[%s474 + $0x10] sm:$0xff]
        %v478 = vld [vmem:[%s474 + $0x18] sm:$0xff]
        %v479 = vmul.f32 %v466, %v475
        %v480 = vmul.f32 %v458, %v476
        %v481 = vmul.f32 %v467, %v477
        %v482 = vmul.f32 %v459, %v478
        %v483 = vmul.f32 %v468, %v475
        %v484 = vmul.f32 %v460, %v476
        %v485 = vmul.f32 %v469, %v477
        %v486 = vmul.f32 %v461, %v478
        %v487 = vmul.f32 %v470, %v475
        %v488 = vmul.f32 %v462, %v476
        %v489 = vmul.f32 %v471, %v477
        %v490 = vmul.f32 %v463, %v478
        %v491 = vmul.f32 %v472, %v475
        %v492 = vmul.f32 %v464, %v476
        %v493 = vmul.f32 %v473, %v477
        %v494 = vmul.f32 %v465, %v478
        %495 = vst [vmem:[#allocation2 + $0x20] sm:$0xff] %v479
        %496 = vst [vmem:[#allocation2 + $0x28] sm:$0xff] %v480
        %497 = vst [vmem:[#allocation2 + $0x30] sm:$0xff] %v481
        %498 = vst [vmem:[#allocation2 + $0x38] sm:$0xff] %v482
        %499 = vst [vmem:[#allocation2 + $0x140] sm:$0xff] %v483
        %500 = vst [vmem:[#allocation2 + $0x148] sm:$0xff] %v484
        %501 = vst [vmem:[#allocation2 + $0x150] sm:$0xff] %v485
        %502 = vst [vmem:[#allocation2 + $0x158] sm:$0xff] %v486
        %503 = vst [vmem:[#allocation2 + $0x260] sm:$0xff] %v487
        %504 = vst [vmem:[#allocation2 + $0x268] sm:$0xff] %v488
        %505 = vst [vmem:[#allocation2 + $0x270] sm:$0xff] %v489
        %506 = vst [vmem:[#allocation2 + $0x278] sm:$0xff] %v490
        %507 = vst [vmem:[#allocation2 + $0x380] sm:$0xff] %v491
        %508 = vst [vmem:[#allocation2 + $0x388] sm:$0xff] %v492
        %509 = vst [vmem:[#allocation2 + $0x390] sm:$0xff] %v493
        %510 = vst [vmem:[#allocation2 + $0x398] sm:$0xff] %v494
        %511 = vrot.lane.b32.xlu0 %v322, 15
        %v512 = vpop.permute.xlu0 %511
        %513 = vrot.lane.b32.xlu0 %v324, 15
        %v514 = vpop.permute.xlu0 %513
        %515 = vrot.lane.b32.xlu0 %v326, 15
        %v516 = vpop.permute.xlu0 %515
        %517 = vrot.lane.b32.xlu0 %v328, 15
        %v518 = vpop.permute.xlu0 %517
        %519 = vrot.lane.b32.xlu0 %v330, 15
        %v520 = vpop.permute.xlu0 %519
        %521 = vrot.lane.b32.xlu0 %v332, 15
        %v522 = vpop.permute.xlu0 %521
        %523 = vrot.lane.b32.xlu0 %v334, 15
        %v524 = vpop.permute.xlu0 %523
        %525 = vrot.lane.b32.xlu0 %v336, 15
        %v526 = vpop.permute.xlu0 %525
        %527 = vrot.lane.b32.xlu0 %v323, 15
        %v528 = vpop.permute.xlu0 %527
        %529 = vrot.lane.b32.xlu0 %v325, 15
        %v530 = vpop.permute.xlu0 %529
        %531 = vrot.lane.b32.xlu0 %v327, 15
        %v532 = vpop.permute.xlu0 %531
        %533 = vrot.lane.b32.xlu0 %v329, 15
        %v534 = vpop.permute.xlu0 %533
        %535 = vrot.lane.b32.xlu0 %v331, 15
        %v536 = vpop.permute.xlu0 %535
        %537 = vrot.lane.b32.xlu0 %v333, 15
        %v538 = vpop.permute.xlu0 %537
        %539 = vrot.lane.b32.xlu0 %v335, 15
        %v540 = vpop.permute.xlu0 %539
        %541 = vrot.lane.b32.xlu0 %v337, 15
        %v542 = vpop.permute.xlu0 %541
        %vm543 = vcmp.lt.s32.totalorder %v371, 15
        %v544 = vsel %vm543, %v512, %v528
        %v545 = vsel %vm543, %v514, %v530
        %v546 = vsel %vm543, %v516, %v532
        %v547 = vsel %vm543, %v518, %v534
        %v548 = vsel %vm543, %v520, %v536
        %v549 = vsel %vm543, %v522, %v538
        %v550 = vsel %vm543, %v524, %v540
        %v551 = vsel %vm543, %v526, %v542
        %v552 = vsel %vm543, %v528, %v512
        %v553 = vsel %vm543, %v530, %v514
        %v554 = vsel %vm543, %v532, %v516
        %v555 = vsel %vm543, %v534, %v518
        %v556 = vsel %vm543, %v536, %v520
        %v557 = vsel %vm543, %v538, %v522
        %v558 = vsel %vm543, %v540, %v524
        %v559 = vsel %vm543, %v542, %v526
        %s560 = scalar_lea.vmem [#allocation6], 64
        %v561 = vld [vmem:[%s560] sm:$0xff]
        %v562 = vld [vmem:[%s560 + $0x8] sm:$0xff]
        %v563 = vld [vmem:[%s560 + $0x10] sm:$0xff]
        %v564 = vld [vmem:[%s560 + $0x18] sm:$0xff]
        %v565 = vmul.f32 %v552, %v561
        %v566 = vmul.f32 %v544, %v562
        %v567 = vmul.f32 %v553, %v563
        %v568 = vmul.f32 %v545, %v564
        %v569 = vmul.f32 %v554, %v561
        %v570 = vmul.f32 %v546, %v562
        %v571 = vmul.f32 %v555, %v563
        %v572 = vmul.f32 %v547, %v564
        %v573 = vmul.f32 %v556, %v561
        %v574 = vmul.f32 %v548, %v562
        %v575 = vmul.f32 %v557, %v563
        %v576 = vmul.f32 %v549, %v564
        %v577 = vmul.f32 %v558, %v561
        %v578 = vmul.f32 %v550, %v562
        %v579 = vmul.f32 %v559, %v563
        %v580 = vmul.f32 %v551, %v564
        %581 = vst [vmem:[#allocation2 + $0x40] sm:$0xff] %v565
        %582 = vst [vmem:[#allocation2 + $0x48] sm:$0xff] %v566
        %583 = vst [vmem:[#allocation2 + $0x50] sm:$0xff] %v567
        %584 = vst [vmem:[#allocation2 + $0x58] sm:$0xff] %v568
        %585 = vst [vmem:[#allocation2 + $0x160] sm:$0xff] %v569
        %586 = vst [vmem:[#allocation2 + $0x168] sm:$0xff] %v570
        %587 = vst [vmem:[#allocation2 + $0x170] sm:$0xff] %v571
        %588 = vst [vmem:[#allocation2 + $0x178] sm:$0xff] %v572
        %589 = vst [vmem:[#allocation2 + $0x280] sm:$0xff] %v573
        %590 = vst [vmem:[#allocation2 + $0x288] sm:$0xff] %v574
        %591 = vst [vmem:[#allocation2 + $0x290] sm:$0xff] %v575
        %592 = vst [vmem:[#allocation2 + $0x298] sm:$0xff] %v576
        %593 = vst [vmem:[#allocation2 + $0x3a0] sm:$0xff] %v577
        %594 = vst [vmem:[#allocation2 + $0x3a8] sm:$0xff] %v578
        %595 = vst [vmem:[#allocation2 + $0x3b0] sm:$0xff] %v579
        %596 = vst [vmem:[#allocation2 + $0x3b8] sm:$0xff] %v580
        %597 = vrot.lane.b32.xlu0 %v322, 1
        %v598 = vpop.permute.xlu0 %597
        %599 = vrot.lane.b32.xlu0 %v324, 1
        %v600 = vpop.permute.xlu0 %599
        %601 = vrot.lane.b32.xlu0 %v326, 1
        %v602 = vpop.permute.xlu0 %601
        %603 = vrot.lane.b32.xlu0 %v328, 1
        %v604 = vpop.permute.xlu0 %603
        %605 = vrot.lane.b32.xlu0 %v330, 1
        %v606 = vpop.permute.xlu0 %605
        %607 = vrot.lane.b32.xlu0 %v332, 1
        %v608 = vpop.permute.xlu0 %607
        %609 = vrot.lane.b32.xlu0 %v334, 1
        %v610 = vpop.permute.xlu0 %609
        %611 = vrot.lane.b32.xlu0 %v336, 1
        %v612 = vpop.permute.xlu0 %611
        %613 = vrot.lane.b32.xlu0 %v323, 1
        %v614 = vpop.permute.xlu0 %613
        %615 = vrot.lane.b32.xlu0 %v325, 1
        %v616 = vpop.permute.xlu0 %615
        %617 = vrot.lane.b32.xlu0 %v327, 1
        %v618 = vpop.permute.xlu0 %617
        %619 = vrot.lane.b32.xlu0 %v329, 1
        %v620 = vpop.permute.xlu0 %619
        %621 = vrot.lane.b32.xlu0 %v331, 1
        %v622 = vpop.permute.xlu0 %621
        %623 = vrot.lane.b32.xlu0 %v333, 1
        %v624 = vpop.permute.xlu0 %623
        %625 = vrot.lane.b32.xlu0 %v335, 1
        %v626 = vpop.permute.xlu0 %625
        %627 = vrot.lane.b32.xlu0 %v337, 1
        %v628 = vpop.permute.xlu0 %627
        %vm629 = vcmp.lt.s32.totalorder %v371, 1
        %v630 = vsel %vm629, %v598, %v614
        %v631 = vsel %vm629, %v600, %v616
        %v632 = vsel %vm629, %v602, %v618
        %v633 = vsel %vm629, %v604, %v620
        %v634 = vsel %vm629, %v606, %v622
        %v635 = vsel %vm629, %v608, %v624
        %v636 = vsel %vm629, %v610, %v626
        %v637 = vsel %vm629, %v612, %v628
        %v638 = vsel %vm629, %v614, %v598
        %v639 = vsel %vm629, %v616, %v600
        %v640 = vsel %vm629, %v618, %v602
        %v641 = vsel %vm629, %v620, %v604
        %v642 = vsel %vm629, %v622, %v606
        %v643 = vsel %vm629, %v624, %v608
        %v644 = vsel %vm629, %v626, %v610
        %v645 = vsel %vm629, %v628, %v612
        %s646 = scalar_lea.vmem [#allocation6], 96
        %v647 = vld [vmem:[%s646] sm:$0xff]
        %v648 = vld [vmem:[%s646 + $0x8] sm:$0xff]
        %v649 = vld [vmem:[%s646 + $0x10] sm:$0xff]
        %v650 = vld [vmem:[%s646 + $0x18] sm:$0xff]
        %v651 = vmul.f32 %v638, %v647
        %v652 = vmul.f32 %v630, %v648
        %v653 = vmul.f32 %v639, %v649
        %v654 = vmul.f32 %v631, %v650
        %v655 = vmul.f32 %v640, %v647
        %v656 = vmul.f32 %v632, %v648
        %v657 = vmul.f32 %v641, %v649
        %v658 = vmul.f32 %v633, %v650
        %v659 = vmul.f32 %v642, %v647
        %v660 = vmul.f32 %v634, %v648
        %v661 = vmul.f32 %v643, %v649
        %v662 = vmul.f32 %v635, %v650
        %v663 = vmul.f32 %v644, %v647
        %v664 = vmul.f32 %v636, %v648
        %v665 = vmul.f32 %v645, %v649
        %v666 = vmul.f32 %v637, %v650
        %667 = vst [vmem:[#allocation2 + $0x60] sm:$0xff] %v651
        %668 = vst [vmem:[#allocation2 + $0x68] sm:$0xff] %v652
        %669 = vst [vmem:[#allocation2 + $0x70] sm:$0xff] %v653
        %670 = vst [vmem:[#allocation2 + $0x78] sm:$0xff] %v654
        %671 = vst [vmem:[#allocation2 + $0x180] sm:$0xff] %v655
        %672 = vst [vmem:[#allocation2 + $0x188] sm:$0xff] %v656
        %673 = vst [vmem:[#allocation2 + $0x190] sm:$0xff] %v657
        %674 = vst [vmem:[#allocation2 + $0x198] sm:$0xff] %v658
        %675 = vst [vmem:[#allocation2 + $0x2a0] sm:$0xff] %v659
        %676 = vst [vmem:[#allocation2 + $0x2a8] sm:$0xff] %v660
        %677 = vst [vmem:[#allocation2 + $0x2b0] sm:$0xff] %v661
        %678 = vst [vmem:[#allocation2 + $0x2b8] sm:$0xff] %v662
        %679 = vst [vmem:[#allocation2 + $0x3c0] sm:$0xff] %v663
        %680 = vst [vmem:[#allocation2 + $0x3c8] sm:$0xff] %v664
        %681 = vst [vmem:[#allocation2 + $0x3d0] sm:$0xff] %v665
        %682 = vst [vmem:[#allocation2 + $0x3d8] sm:$0xff] %v666
        %683 = vst [vmem:[#allocation2 + $0x80] sm:$0xff] %v322
        %684 = vst [vmem:[#allocation2 + $0x88] sm:$0xff] %v323
        %685 = vst [vmem:[#allocation2 + $0x90] sm:$0xff] %v324
        %686 = vst [vmem:[#allocation2 + $0x98] sm:$0xff] %v325
        %687 = vst [vmem:[#allocation2 + $0x1a0] sm:$0xff] %v326
        %688 = vst [vmem:[#allocation2 + $0x1a8] sm:$0xff] %v327
        %689 = vst [vmem:[#allocation2 + $0x1b0] sm:$0xff] %v328
        %690 = vst [vmem:[#allocation2 + $0x1b8] sm:$0xff] %v329
        %691 = vst [vmem:[#allocation2 + $0x2c0] sm:$0xff] %v330
        %692 = vst [vmem:[#allocation2 + $0x2c8] sm:$0xff] %v331
        %693 = vst [vmem:[#allocation2 + $0x2d0] sm:$0xff] %v332
        %694 = vst [vmem:[#allocation2 + $0x2d8] sm:$0xff] %v333
        %695 = vst [vmem:[#allocation2 + $0x3e0] sm:$0xff] %v334
        %696 = vst [vmem:[#allocation2 + $0x3e8] sm:$0xff] %v335
        %697 = vst [vmem:[#allocation2 + $0x3f0] sm:$0xff] %v336
        %698 = vst [vmem:[#allocation2 + $0x3f8] sm:$0xff] %v337
        %699 = vrot.lane.b32.xlu0 %v322, 127
        %v700 = vpop.permute.xlu0 %699
        %701 = vrot.lane.b32.xlu0 %v324, 127
        %v702 = vpop.permute.xlu0 %701
        %703 = vrot.lane.b32.xlu0 %v326, 127
        %v704 = vpop.permute.xlu0 %703
        %705 = vrot.lane.b32.xlu0 %v328, 127
        %v706 = vpop.permute.xlu0 %705
        %707 = vrot.lane.b32.xlu0 %v330, 127
        %v708 = vpop.permute.xlu0 %707
        %709 = vrot.lane.b32.xlu0 %v332, 127
        %v710 = vpop.permute.xlu0 %709
        %711 = vrot.lane.b32.xlu0 %v334, 127
        %v712 = vpop.permute.xlu0 %711
        %713 = vrot.lane.b32.xlu0 %v336, 127
        %v714 = vpop.permute.xlu0 %713
        %715 = vrot.lane.b32.xlu0 %v323, 127
        %v716 = vpop.permute.xlu0 %715
        %717 = vrot.lane.b32.xlu0 %v325, 127
        %v718 = vpop.permute.xlu0 %717
        %719 = vrot.lane.b32.xlu0 %v327, 127
        %v720 = vpop.permute.xlu0 %719
        %721 = vrot.lane.b32.xlu0 %v329, 127
        %v722 = vpop.permute.xlu0 %721
        %723 = vrot.lane.b32.xlu0 %v331, 127
        %v724 = vpop.permute.xlu0 %723
        %725 = vrot.lane.b32.xlu0 %v333, 127
        %v726 = vpop.permute.xlu0 %725
        %727 = vrot.lane.b32.xlu0 %v335, 127
        %v728 = vpop.permute.xlu0 %727
        %729 = vrot.lane.b32.xlu0 %v337, 127
        %v730 = vpop.permute.xlu0 %729
        %vm731 = vcmp.lt.s32.totalorder %v371, 127
        %v732 = vsel %vm731, %v700, %v716
        %v733 = vsel %vm731, %v702, %v718
        %v734 = vsel %vm731, %v704, %v720
        %v735 = vsel %vm731, %v706, %v722
        %v736 = vsel %vm731, %v708, %v724
        %v737 = vsel %vm731, %v710, %v726
        %v738 = vsel %vm731, %v712, %v728
        %v739 = vsel %vm731, %v714, %v730
        %v740 = vsel %vm731, %v716, %v700
        %v741 = vsel %vm731, %v718, %v702
        %v742 = vsel %vm731, %v720, %v704
        %v743 = vsel %vm731, %v722, %v706
        %v744 = vsel %vm731, %v724, %v708
        %v745 = vsel %vm731, %v726, %v710
        %v746 = vsel %vm731, %v728, %v712
        %v747 = vsel %vm731, %v730, %v714
        %s748 = scalar_lea.vmem [#allocation6], 160
        %v749 = vld [vmem:[%s748] sm:$0xff]
        %v750 = vld [vmem:[%s748 + $0x8] sm:$0xff]
        %v751 = vld [vmem:[%s748 + $0x10] sm:$0xff]
        %v752 = vld [vmem:[%s748 + $0x18] sm:$0xff]
        %v753 = vmul.f32 %v732, %v749
        %v754 = vmul.f32 %v740, %v750
        %v755 = vmul.f32 %v733, %v751
        %v756 = vmul.f32 %v741, %v752
        %v757 = vmul.f32 %v734, %v749
        %v758 = vmul.f32 %v742, %v750
        %v759 = vmul.f32 %v735, %v751
        %v760 = vmul.f32 %v743, %v752
        %v761 = vmul.f32 %v736, %v749
        %v762 = vmul.f32 %v744, %v750
        %v763 = vmul.f32 %v737, %v751
        %v764 = vmul.f32 %v745, %v752
        %v765 = vmul.f32 %v738, %v749
        %v766 = vmul.f32 %v746, %v750
        %v767 = vmul.f32 %v739, %v751
        %v768 = vmul.f32 %v747, %v752
        %769 = vst [vmem:[#allocation2 + $0xa0] sm:$0xff] %v753
        %770 = vst [vmem:[#allocation2 + $0xa8] sm:$0xff] %v754
        %771 = vst [vmem:[#allocation2 + $0xb0] sm:$0xff] %v755
        %772 = vst [vmem:[#allocation2 + $0xb8] sm:$0xff] %v756
        %773 = vst [vmem:[#allocation2 + $0x1c0] sm:$0xff] %v757
        %774 = vst [vmem:[#allocation2 + $0x1c8] sm:$0xff] %v758
        %775 = vst [vmem:[#allocation2 + $0x1d0] sm:$0xff] %v759
        %776 = vst [vmem:[#allocation2 + $0x1d8] sm:$0xff] %v760
        %777 = vst [vmem:[#allocation2 + $0x2e0] sm:$0xff] %v761
        %778 = vst [vmem:[#allocation2 + $0x2e8] sm:$0xff] %v762
        %779 = vst [vmem:[#allocation2 + $0x2f0] sm:$0xff] %v763
        %780 = vst [vmem:[#allocation2 + $0x2f8] sm:$0xff] %v764
        %781 = vst [vmem:[#allocation2 + $0x400] sm:$0xff] %v765
        %782 = vst [vmem:[#allocation2 + $0x408] sm:$0xff] %v766
        %783 = vst [vmem:[#allocation2 + $0x410] sm:$0xff] %v767
        %784 = vst [vmem:[#allocation2 + $0x418] sm:$0xff] %v768
        %785 = vrot.lane.b32.xlu0 %v322, 113
        %v786 = vpop.permute.xlu0 %785
        %787 = vrot.lane.b32.xlu0 %v324, 113
        %v788 = vpop.permute.xlu0 %787
        %789 = vrot.lane.b32.xlu0 %v326, 113
        %v790 = vpop.permute.xlu0 %789
        %791 = vrot.lane.b32.xlu0 %v328, 113
        %v792 = vpop.permute.xlu0 %791
        %793 = vrot.lane.b32.xlu0 %v330, 113
        %v794 = vpop.permute.xlu0 %793
        %795 = vrot.lane.b32.xlu0 %v332, 113
        %v796 = vpop.permute.xlu0 %795
        %797 = vrot.lane.b32.xlu0 %v334, 113
        %v798 = vpop.permute.xlu0 %797
        %799 = vrot.lane.b32.xlu0 %v336, 113
        %v800 = vpop.permute.xlu0 %799
        %801 = vrot.lane.b32.xlu0 %v323, 113
        %v802 = vpop.permute.xlu0 %801
        %803 = vrot.lane.b32.xlu0 %v325, 113
        %v804 = vpop.permute.xlu0 %803
        %805 = vrot.lane.b32.xlu0 %v327, 113
        %v806 = vpop.permute.xlu0 %805
        %807 = vrot.lane.b32.xlu0 %v329, 113
        %v808 = vpop.permute.xlu0 %807
        %809 = vrot.lane.b32.xlu0 %v331, 113
        %v810 = vpop.permute.xlu0 %809
        %811 = vrot.lane.b32.xlu0 %v333, 113
        %v812 = vpop.permute.xlu0 %811
        %813 = vrot.lane.b32.xlu0 %v335, 113
        %v814 = vpop.permute.xlu0 %813
        %815 = vrot.lane.b32.xlu0 %v337, 113
        %v816 = vpop.permute.xlu0 %815
        %vm817 = vcmp.lt.s32.totalorder %v371, 113
        %v818 = vsel %vm817, %v786, %v802
        %v819 = vsel %vm817, %v788, %v804
        %v820 = vsel %vm817, %v790, %v806
        %v821 = vsel %vm817, %v792, %v808
        %v822 = vsel %vm817, %v794, %v810
        %v823 = vsel %vm817, %v796, %v812
        %v824 = vsel %vm817, %v798, %v814
        %v825 = vsel %vm817, %v800, %v816
        %v826 = vsel %vm817, %v802, %v786
        %v827 = vsel %vm817, %v804, %v788
        %v828 = vsel %vm817, %v806, %v790
        %v829 = vsel %vm817, %v808, %v792
        %v830 = vsel %vm817, %v810, %v794
        %v831 = vsel %vm817, %v812, %v796
        %v832 = vsel %vm817, %v814, %v798
        %v833 = vsel %vm817, %v816, %v800
        %s834 = scalar_lea.vmem [#allocation6], 192
        %v835 = vld [vmem:[%s834] sm:$0xff]
        %v836 = vld [vmem:[%s834 + $0x8] sm:$0xff]
        %v837 = vld [vmem:[%s834 + $0x10] sm:$0xff]
        %v838 = vld [vmem:[%s834 + $0x18] sm:$0xff]
        %v839 = vmul.f32 %v818, %v835
        %v840 = vmul.f32 %v826, %v836
        %v841 = vmul.f32 %v819, %v837
        %v842 = vmul.f32 %v827, %v838
        %v843 = vmul.f32 %v820, %v835
        %v844 = vmul.f32 %v828, %v836
        %v845 = vmul.f32 %v821, %v837
        %v846 = vmul.f32 %v829, %v838
        %v847 = vmul.f32 %v822, %v835
        %v848 = vmul.f32 %v830, %v836
        %v849 = vmul.f32 %v823, %v837
        %v850 = vmul.f32 %v831, %v838
        %v851 = vmul.f32 %v824, %v835
        %v852 = vmul.f32 %v832, %v836
        %v853 = vmul.f32 %v825, %v837
        %v854 = vmul.f32 %v833, %v838
        %855 = vst [vmem:[#allocation2 + $0xc0] sm:$0xff] %v839
        %856 = vst [vmem:[#allocation2 + $0xc8] sm:$0xff] %v840
        %857 = vst [vmem:[#allocation2 + $0xd0] sm:$0xff] %v841
        %858 = vst [vmem:[#allocation2 + $0xd8] sm:$0xff] %v842
        %859 = vst [vmem:[#allocation2 + $0x1e0] sm:$0xff] %v843
        %860 = vst [vmem:[#allocation2 + $0x1e8] sm:$0xff] %v844
        %861 = vst [vmem:[#allocation2 + $0x1f0] sm:$0xff] %v845
        %862 = vst [vmem:[#allocation2 + $0x1f8] sm:$0xff] %v846
        %863 = vst [vmem:[#allocation2 + $0x300] sm:$0xff] %v847
        %864 = vst [vmem:[#allocation2 + $0x308] sm:$0xff] %v848
        %865 = vst [vmem:[#allocation2 + $0x310] sm:$0xff] %v849
        %866 = vst [vmem:[#allocation2 + $0x318] sm:$0xff] %v850
        %867 = vst [vmem:[#allocation2 + $0x420] sm:$0xff] %v851
        %868 = vst [vmem:[#allocation2 + $0x428] sm:$0xff] %v852
        %869 = vst [vmem:[#allocation2 + $0x430] sm:$0xff] %v853
        %870 = vst [vmem:[#allocation2 + $0x438] sm:$0xff] %v854
        %871 = vrot.lane.b32.xlu0 %v322, 112
        %v872 = vpop.permute.xlu0 %871
        %873 = vrot.lane.b32.xlu0 %v324, 112
        %v874 = vpop.permute.xlu0 %873
        %875 = vrot.lane.b32.xlu0 %v326, 112
        %v876 = vpop.permute.xlu0 %875
        %877 = vrot.lane.b32.xlu0 %v328, 112
        %v878 = vpop.permute.xlu0 %877
        %879 = vrot.lane.b32.xlu0 %v330, 112
        %v880 = vpop.permute.xlu0 %879
        %881 = vrot.lane.b32.xlu0 %v332, 112
        %v882 = vpop.permute.xlu0 %881
        %883 = vrot.lane.b32.xlu0 %v334, 112
        %v884 = vpop.permute.xlu0 %883
        %885 = vrot.lane.b32.xlu0 %v336, 112
        %v886 = vpop.permute.xlu0 %885
        %887 = vrot.lane.b32.xlu0 %v323, 112
        %v888 = vpop.permute.xlu0 %887
        %889 = vrot.lane.b32.xlu0 %v325, 112
        %v890 = vpop.permute.xlu0 %889
        %891 = vrot.lane.b32.xlu0 %v327, 112
        %v892 = vpop.permute.xlu0 %891
        %893 = vrot.lane.b32.xlu0 %v329, 112
        %v894 = vpop.permute.xlu0 %893
        %895 = vrot.lane.b32.xlu0 %v331, 112
        %v896 = vpop.permute.xlu0 %895
        %897 = vrot.lane.b32.xlu0 %v333, 112
        %v898 = vpop.permute.xlu0 %897
        %899 = vrot.lane.b32.xlu0 %v335, 112
        %v900 = vpop.permute.xlu0 %899
        %901 = vrot.lane.b32.xlu0 %v337, 112
        %v902 = vpop.permute.xlu0 %901
        %vm903 = vcmp.lt.s32.totalorder %v371, 112
        %v904 = vsel %vm903, %v872, %v888
        %v905 = vsel %vm903, %v874, %v890
        %v906 = vsel %vm903, %v876, %v892
        %v907 = vsel %vm903, %v878, %v894
        %v908 = vsel %vm903, %v880, %v896
        %v909 = vsel %vm903, %v882, %v898
        %v910 = vsel %vm903, %v884, %v900
        %v911 = vsel %vm903, %v886, %v902
        %v912 = vsel %vm903, %v888, %v872
        %v913 = vsel %vm903, %v890, %v874
        %v914 = vsel %vm903, %v892, %v876
        %v915 = vsel %vm903, %v894, %v878
        %v916 = vsel %vm903, %v896, %v880
        %v917 = vsel %vm903, %v898, %v882
        %v918 = vsel %vm903, %v900, %v884
        %v919 = vsel %vm903, %v902, %v886
        %s920 = scalar_lea.vmem [#allocation6], 224
        %v921 = vld [vmem:[%s920] sm:$0xff]
        %v922 = vld [vmem:[%s920 + $0x8] sm:$0xff]
        %v923 = vld [vmem:[%s920 + $0x10] sm:$0xff]
        %v924 = vld [vmem:[%s920 + $0x18] sm:$0xff]
        %v925 = vmul.f32 %v904, %v921
        %v926 = vmul.f32 %v912, %v922
        %v927 = vmul.f32 %v905, %v923
        %v928 = vmul.f32 %v913, %v924
        %v929 = vmul.f32 %v906, %v921
        %v930 = vmul.f32 %v914, %v922
        %v931 = vmul.f32 %v907, %v923
        %v932 = vmul.f32 %v915, %v924
        %v933 = vmul.f32 %v908, %v921
        %v934 = vmul.f32 %v916, %v922
        %v935 = vmul.f32 %v909, %v923
        %v936 = vmul.f32 %v917, %v924
        %v937 = vmul.f32 %v910, %v921
        %v938 = vmul.f32 %v918, %v922
        %v939 = vmul.f32 %v911, %v923
        %v940 = vmul.f32 %v919, %v924
        %941 = vst [vmem:[#allocation2 + $0xe0] sm:$0xff] %v925
        %942 = vst [vmem:[#allocation2 + $0xe8] sm:$0xff] %v926
        %943 = vst [vmem:[#allocation2 + $0xf0] sm:$0xff] %v927
        %944 = vst [vmem:[#allocation2 + $0xf8] sm:$0xff] %v928
        %945 = vst [vmem:[#allocation2 + $0x200] sm:$0xff] %v929
        %946 = vst [vmem:[#allocation2 + $0x208] sm:$0xff] %v930
        %947 = vst [vmem:[#allocation2 + $0x210] sm:$0xff] %v931
        %948 = vst [vmem:[#allocation2 + $0x218] sm:$0xff] %v932
        %949 = vst [vmem:[#allocation2 + $0x320] sm:$0xff] %v933
        %950 = vst [vmem:[#allocation2 + $0x328] sm:$0xff] %v934
        %951 = vst [vmem:[#allocation2 + $0x330] sm:$0xff] %v935
        %952 = vst [vmem:[#allocation2 + $0x338] sm:$0xff] %v936
        %953 = vst [vmem:[#allocation2 + $0x440] sm:$0xff] %v937
        %954 = vst [vmem:[#allocation2 + $0x448] sm:$0xff] %v938
        %955 = vst [vmem:[#allocation2 + $0x450] sm:$0xff] %v939
        %956 = vst [vmem:[#allocation2 + $0x458] sm:$0xff] %v940
        %957 = vrot.lane.b32.xlu0 %v322, 111
        %v958 = vpop.permute.xlu0 %957
        %959 = vrot.lane.b32.xlu0 %v324, 111
        %v960 = vpop.permute.xlu0 %959
        %961 = vrot.lane.b32.xlu0 %v326, 111
        %v962 = vpop.permute.xlu0 %961
        %963 = vrot.lane.b32.xlu0 %v328, 111
        %v964 = vpop.permute.xlu0 %963
        %965 = vrot.lane.b32.xlu0 %v330, 111
        %v966 = vpop.permute.xlu0 %965
        %967 = vrot.lane.b32.xlu0 %v332, 111
        %v968 = vpop.permute.xlu0 %967
        %969 = vrot.lane.b32.xlu0 %v334, 111
        %v970 = vpop.permute.xlu0 %969
        %971 = vrot.lane.b32.xlu0 %v336, 111
        %v972 = vpop.permute.xlu0 %971
        %973 = vrot.lane.b32.xlu0 %v323, 111
        %v974 = vpop.permute.xlu0 %973
        %975 = vrot.lane.b32.xlu0 %v325, 111
        %v976 = vpop.permute.xlu0 %975
        %977 = vrot.lane.b32.xlu0 %v327, 111
        %v978 = vpop.permute.xlu0 %977
        %979 = vrot.lane.b32.xlu0 %v329, 111
        %v980 = vpop.permute.xlu0 %979
        %981 = vrot.lane.b32.xlu0 %v331, 111
        %v982 = vpop.permute.xlu0 %981
        %983 = vrot.lane.b32.xlu0 %v333, 111
        %v984 = vpop.permute.xlu0 %983
        %985 = vrot.lane.b32.xlu0 %v335, 111
        %v986 = vpop.permute.xlu0 %985
        %987 = vrot.lane.b32.xlu0 %v337, 111
        %v988 = vpop.permute.xlu0 %987
        %vm989 = vcmp.lt.s32.totalorder %v371, 111
        %v990 = vsel %vm989, %v958, %v974
        %v991 = vsel %vm989, %v960, %v976
        %v992 = vsel %vm989, %v962, %v978
        %v993 = vsel %vm989, %v964, %v980
        %v994 = vsel %vm989, %v966, %v982
        %v995 = vsel %vm989, %v968, %v984
        %v996 = vsel %vm989, %v970, %v986
        %v997 = vsel %vm989, %v972, %v988
        %v998 = vsel %vm989, %v974, %v958
        %v999 = vsel %vm989, %v976, %v960
        %v1000 = vsel %vm989, %v978, %v962
        %v1001 = vsel %vm989, %v980, %v964
        %v1002 = vsel %vm989, %v982, %v966
        %v1003 = vsel %vm989, %v984, %v968
        %v1004 = vsel %vm989, %v986, %v970
        %v1005 = vsel %vm989, %v988, %v972
        %s1006 = scalar_lea.vmem [#allocation6], 256
        %v1007 = vld [vmem:[%s1006] sm:$0xff]
        %v1008 = vld [vmem:[%s1006 + $0x8] sm:$0xff]
        %v1009 = vld [vmem:[%s1006 + $0x10] sm:$0xff]
        %v1010 = vld [vmem:[%s1006 + $0x18] sm:$0xff]
        %v1011 = vmul.f32 %v990, %v1007
        %v1012 = vmul.f32 %v998, %v1008
        %v1013 = vmul.f32 %v991, %v1009
        %v1014 = vmul.f32 %v999, %v1010
        %v1015 = vmul.f32 %v992, %v1007
        %v1016 = vmul.f32 %v1000, %v1008
        %v1017 = vmul.f32 %v993, %v1009
        %v1018 = vmul.f32 %v1001, %v1010
        %v1019 = vmul.f32 %v994, %v1007
        %v1020 = vmul.f32 %v1002, %v1008
        %v1021 = vmul.f32 %v995, %v1009
        %v1022 = vmul.f32 %v1003, %v1010
        %v1023 = vmul.f32 %v996, %v1007
        %v1024 = vmul.f32 %v1004, %v1008
        %v1025 = vmul.f32 %v997, %v1009
        %v1026 = vmul.f32 %v1005, %v1010
        %1027 = vst [vmem:[#allocation2 + $0x100] sm:$0xff] %v1011
        %1028 = vst [vmem:[#allocation2 + $0x108] sm:$0xff] %v1012
        %1029 = vst [vmem:[#allocation2 + $0x110] sm:$0xff] %v1013
        %1030 = vst [vmem:[#allocation2 + $0x118] sm:$0xff] %v1014
        %1031 = vst [vmem:[#allocation2 + $0x220] sm:$0xff] %v1015
        %1032 = vst [vmem:[#allocation2 + $0x228] sm:$0xff] %v1016
        %1033 = vst [vmem:[#allocation2 + $0x230] sm:$0xff] %v1017
        %1034 = vst [vmem:[#allocation2 + $0x238] sm:$0xff] %v1018
        %1035 = vst [vmem:[#allocation2 + $0x340] sm:$0xff] %v1019
        %1036 = vst [vmem:[#allocation2 + $0x348] sm:$0xff] %v1020
        %1037 = vst [vmem:[#allocation2 + $0x350] sm:$0xff] %v1021
        %1038 = vst [vmem:[#allocation2 + $0x358] sm:$0xff] %v1022
        %1039 = vst [vmem:[#allocation2 + $0x460] sm:$0xff] %v1023
        %1040 = vst [vmem:[#allocation2 + $0x468] sm:$0xff] %v1024
        %1041 = vst [vmem:[#allocation2 + $0x470] sm:$0xff] %v1025
        %1042 = vst [vmem:[#allocation2 + $0x478] sm:$0xff] %v1026
        %v1043 = vld [vmem:[%s2] sm:$0xff]
        %v1044 = vld [vmem:[%s2 + $0x8] sm:$0xff]
        %v1045 = vld [vmem:[%s2 + $0x10] sm:$0xff]
        %v1046 = vld [vmem:[%s2 + $0x18] sm:$0xff]
        %v1047 = vld [vmem:[#allocation2] sm:$0xff]
        %v1048 = vld [vmem:[#allocation2 + $0x8] sm:$0xff]
        %v1049 = vld [vmem:[#allocation2 + $0x10] sm:$0xff]
        %v1050 = vld [vmem:[#allocation2 + $0x18] sm:$0xff]
        %v1051 = vld [vmem:[#allocation2 + $0x20] sm:$0xff]
        %v1052 = vld [vmem:[#allocation2 + $0x28] sm:$0xff]
        %v1053 = vld [vmem:[#allocation2 + $0x30] sm:$0xff]
        %v1054 = vld [vmem:[#allocation2 + $0x38] sm:$0xff]
        %v1055 = vld [vmem:[#allocation2 + $0x40] sm:$0xff]
        %v1056 = vld [vmem:[#allocation2 + $0x48] sm:$0xff]
        %v1057 = vld [vmem:[#allocation2 + $0x50] sm:$0xff]
        %v1058 = vld [vmem:[#allocation2 + $0x58] sm:$0xff]
        %v1059 = vld [vmem:[#allocation2 + $0x60] sm:$0xff]
        %v1060 = vld [vmem:[#allocation2 + $0x68] sm:$0xff]
        %v1061 = vld [vmem:[#allocation2 + $0x70] sm:$0xff]
        %v1062 = vld [vmem:[#allocation2 + $0x78] sm:$0xff]
        %v1063 = vld [vmem:[#allocation2 + $0x80] sm:$0xff]
        %v1064 = vld [vmem:[#allocation2 + $0x88] sm:$0xff]
        %v1065 = vld [vmem:[#allocation2 + $0x90] sm:$0xff]
        %v1066 = vld [vmem:[#allocation2 + $0x98] sm:$0xff]
        %v1067 = vld [vmem:[#allocation2 + $0xa0] sm:$0xff]
        %v1068 = vld [vmem:[#allocation2 + $0xa8] sm:$0xff]
        %v1069 = vld [vmem:[#allocation2 + $0xb0] sm:$0xff]
        %v1070 = vld [vmem:[#allocation2 + $0xb8] sm:$0xff]
        %v1071 = vld [vmem:[#allocation2 + $0xc0] sm:$0xff]
        %v1072 = vld [vmem:[#allocation2 + $0xc8] sm:$0xff]
        %v1073 = vld [vmem:[#allocation2 + $0xd0] sm:$0xff]
        %v1074 = vld [vmem:[#allocation2 + $0xd8] sm:$0xff]
        %v1075 = vld [vmem:[#allocation2 + $0xe0] sm:$0xff]
        %v1076 = vld [vmem:[#allocation2 + $0xe8] sm:$0xff]
        %v1077 = vld [vmem:[#allocation2 + $0xf0] sm:$0xff]
        %v1078 = vld [vmem:[#allocation2 + $0xf8] sm:$0xff]
        %v1079 = vld [vmem:[#allocation2 + $0x100] sm:$0xff]
        %v1080 = vld [vmem:[#allocation2 + $0x108] sm:$0xff]
        %v1081 = vld [vmem:[#allocation2 + $0x110] sm:$0xff]
        %v1082 = vld [vmem:[#allocation2 + $0x118] sm:$0xff]
        %vm1083 = vcmask 130048
        %v1085 = vsel %vm1083, %v1044, 0
        %v1088 = vsel %vm1083, %v1046, 0
        %1090 = vmatprep.subr.mxu0 %v1048
        %1091 = vmatpush1.msra.mxu0 %v1047
        %1092 = vmatprep.subr.mxu0 %v1050
        %1093 = vmatpush1.msra.mxu0 %v1049
        %1094 = vmatprep.subr.mxu0 %v1052
        %1095 = vmatpush1.msra.mxu0 %v1051
        %1096 = vmatprep.subr.mxu0 %v1054
        %1097 = vmatpush1.msra.mxu0 %v1053
        %1098 = vmatprep.subr.mxu0 %v1056
        %1099 = vmatpush1.msra.mxu0 %v1055
        %1100 = vmatprep.subr.mxu0 %v1058
        %1101 = vmatpush1.msra.mxu0 %v1057
        %1102 = vmatprep.subr.mxu0 %v1060
        %1103 = vmatpush1.msra.mxu0 %v1059
        %1104 = vmatprep.subr.mxu0 %v1062
        %1105 = vmatpush1.msra.mxu0 %v1061
        %1106 = vmatprep.subr.mxu0 %v1064
        %1107 = vmatpush1.msra.mxu0 %v1063
        %1108 = vmatprep.subr.mxu0 %v1066
        %1109 = vmatpush1.msra.mxu0 %v1065
        %1110 = vmatprep.subr.mxu0 %v1068
        %1111 = vmatpush1.msra.mxu0 %v1067
        %1112 = vmatprep.subr.mxu0 %v1070
        %1113 = vmatpush1.msra.mxu0 %v1069
        %1114 = vmatprep.subr.mxu0 %v1072
        %1115 = vmatpush1.msra.mxu0 %v1071
        %1116 = vmatprep.subr.mxu0 %v1074
        %1117 = vmatpush1.msra.mxu0 %v1073
        %1118 = vmatprep.subr.mxu0 %v1076
        %1119 = vmatpush1.msra.mxu0 %v1075
        %1120 = vmatprep.subr.mxu0 %v1078
        %1121 = vmatpush1.msra.mxu0 %v1077
        %1122 = vmatprep.subr.mxu0 %v1080
        %1123 = vmatpush1.msra.mxu0 %v1079
        %1124 = vmatprep.subr.mxu0 %v1082
        %1125 = vmatpush1.msra.mxu0 %v1081
        %1126 = vmatprep.subr.mxu0 0.0
        %1127 = vmatpush1.msra.mxu0 0.0
        %1128 = vmatprep.subr.mxu0 0.0
        %1129 = vmatpush1.msra.mxu0 0.0
        %1130 = vmatprep.subr.mxu0 0.0
        %1131 = vmatpush1.msra.mxu0 0.0
        %1132 = vmatprep.subr.mxu0 0.0
        %1133 = vmatpush1.msra.mxu0 0.0
        %1134 = vmatprep.subr.mxu0 0.0
        %1135 = vmatpush1.msra.mxu0 0.0
        %1136 = vmatprep.subr.mxu0 0.0
        %1137 = vmatpush1.msra.mxu0 0.0
        %1138 = vmatprep.subr.mxu0 0.0
        %1139 = vmatpush1.msra.mxu0 0.0
        %1140 = vmatprep.subr.mxu0 0.0
        %1141 = vmatpush1.msra.mxu0 0.0
        %1142 = vmatprep.subr.mxu0 0.0
        %1143 = vmatpush1.msra.mxu0 0.0
        %1144 = vmatprep.subr.mxu0 0.0
        %1145 = vmatpush1.msra.mxu0 0.0
        %1146 = vmatprep.subr.mxu0 0.0
        %1147 = vmatpush1.msra.mxu0 0.0
        %1148 = vmatprep.subr.mxu0 0.0
        %1149 = vmatpush1.msra.mxu0 0.0
        %1150 = vmatprep.subr.mxu0 0.0
        %1151 = vmatpush1.msra.mxu0 0.0
        %1152 = vmatprep.subr.mxu0 0.0
        %1153 = vmatpush1.msra.mxu0 0.0
        %1154 = vmatprep.mubr.f32.mxu0 %v1085
        %1155 = vmatmul.mubr.f32.gmra.mrb[0].mxu0 %v1043
        %v1156 = vpop.f32.mrb[0].mxu0
        %v1157 = vadd.f32 0.0, %v1156
        %v1158 = vpop.f32.mrb[0].mxu0
        %v1159 = vadd.f32 0.0, %v1158
        %1160 = vmatprep.mubr.f32.mxu0 %v1088
        %1161 = vmatmul.mubr.f32.gmra.mrb[0].mxu0 %v1045
        %v1162 = vpop.f32.mrb[0].mxu0
        %v1163 = vadd.f32 0.0, %v1162
        %v1164 = vpop.f32.mrb[0].mxu0
        %v1165 = vadd.f32 0.0, %v1164
        %1166 = vdwg.mxu0
        %1167 = vst [vmem:[%s231 + $0x20] sm:$0xff] %v1157
        %1168 = vst [vmem:[%s231 + $0x28] sm:$0xff] %v1159
        %1169 = vst [vmem:[%s231 + $0x30] sm:$0xff] %v1163
        %1170 = vst [vmem:[%s231 + $0x38] sm:$0xff] %v1165
        %s1171 = scalar_lea.vmem [#allocation2], 288
        %v1172 = vld [vmem:[%s1171] sm:$0xff]
        %v1173 = vld [vmem:[%s1171 + $0x8] sm:$0xff]
        %v1174 = vld [vmem:[%s1171 + $0x10] sm:$0xff]
        %v1175 = vld [vmem:[%s1171 + $0x18] sm:$0xff]
        %v1176 = vld [vmem:[%s1171 + $0x20] sm:$0xff]
        %v1177 = vld [vmem:[%s1171 + $0x28] sm:$0xff]
        %v1178 = vld [vmem:[%s1171 + $0x30] sm:$0xff]
        %v1179 = vld [vmem:[%s1171 + $0x38] sm:$0xff]
        %v1180 = vld [vmem:[%s1171 + $0x40] sm:$0xff]
        %v1181 = vld [vmem:[%s1171 + $0x48] sm:$0xff]
        %v1182 = vld [vmem:[%s1171 + $0x50] sm:$0xff]
        %v1183 = vld [vmem:[%s1171 + $0x58] sm:$0xff]
        %v1184 = vld [vmem:[%s1171 + $0x60] sm:$0xff]
        %v1185 = vld [vmem:[%s1171 + $0x68] sm:$0xff]
        %v1186 = vld [vmem:[%s1171 + $0x70] sm:$0xff]
        %v1187 = vld [vmem:[%s1171 + $0x78] sm:$0xff]
        %v1188 = vld [vmem:[%s1171 + $0x80] sm:$0xff]
        %v1189 = vld [vmem:[%s1171 + $0x88] sm:$0xff]
        %v1190 = vld [vmem:[%s1171 + $0x90] sm:$0xff]
        %v1191 = vld [vmem:[%s1171 + $0x98] sm:$0xff]
        %v1192 = vld [vmem:[%s1171 + $0xa0] sm:$0xff]
        %v1193 = vld [vmem:[%s1171 + $0xa8] sm:$0xff]
        %v1194 = vld [vmem:[%s1171 + $0xb0] sm:$0xff]
        %v1195 = vld [vmem:[%s1171 + $0xb8] sm:$0xff]
        %v1196 = vld [vmem:[%s1171 + $0xc0] sm:$0xff]
        %v1197 = vld [vmem:[%s1171 + $0xc8] sm:$0xff]
        %v1198 = vld [vmem:[%s1171 + $0xd0] sm:$0xff]
        %v1199 = vld [vmem:[%s1171 + $0xd8] sm:$0xff]
        %v1200 = vld [vmem:[%s1171 + $0xe0] sm:$0xff]
        %v1201 = vld [vmem:[%s1171 + $0xe8] sm:$0xff]
        %v1202 = vld [vmem:[%s1171 + $0xf0] sm:$0xff]
        %v1203 = vld [vmem:[%s1171 + $0xf8] sm:$0xff]
        %v1204 = vld [vmem:[%s1171 + $0x100] sm:$0xff]
        %v1205 = vld [vmem:[%s1171 + $0x108] sm:$0xff]
        %v1206 = vld [vmem:[%s1171 + $0x110] sm:$0xff]
        %v1207 = vld [vmem:[%s1171 + $0x118] sm:$0xff]
        %1208 = vmatprep.subr.mxu0 %v1173
        %1209 = vmatpush1.msra.mxu0 %v1172
        %1210 = vmatprep.subr.mxu0 %v1175
        %1211 = vmatpush1.msra.mxu0 %v1174
        %1212 = vmatprep.subr.mxu0 %v1177
        %1213 = vmatpush1.msra.mxu0 %v1176
        %1214 = vmatprep.subr.mxu0 %v1179
        %1215 = vmatpush1.msra.mxu0 %v1178
        %1216 = vmatprep.subr.mxu0 %v1181
        %1217 = vmatpush1.msra.mxu0 %v1180
        %1218 = vmatprep.subr.mxu0 %v1183
        %1219 = vmatpush1.msra.mxu0 %v1182
        %1220 = vmatprep.subr.mxu0 %v1185
        %1221 = vmatpush1.msra.mxu0 %v1184
        %1222 = vmatprep.subr.mxu0 %v1187
        %1223 = vmatpush1.msra.mxu0 %v1186
        %1224 = vmatprep.subr.mxu0 %v1189
        %1225 = vmatpush1.msra.mxu0 %v1188
        %1226 = vmatprep.subr.mxu0 %v1191
        %1227 = vmatpush1.msra.mxu0 %v1190
        %1228 = vmatprep.subr.mxu0 %v1193
        %1229 = vmatpush1.msra.mxu0 %v1192
        %1230 = vmatprep.subr.mxu0 %v1195
        %1231 = vmatpush1.msra.mxu0 %v1194
        %1232 = vmatprep.subr.mxu0 %v1197
        %1233 = vmatpush1.msra.mxu0 %v1196
        %1234 = vmatprep.subr.mxu0 %v1199
        %1235 = vmatpush1.msra.mxu0 %v1198
        %1236 = vmatprep.subr.mxu0 %v1201
        %1237 = vmatpush1.msra.mxu0 %v1200
        %1238 = vmatprep.subr.mxu0 %v1203
        %1239 = vmatpush1.msra.mxu0 %v1202
        %1240 = vmatprep.subr.mxu0 %v1205
        %1241 = vmatpush1.msra.mxu0 %v1204
        %1242 = vmatprep.subr.mxu0 %v1207
        %1243 = vmatpush1.msra.mxu0 %v1206
        %1244 = vmatprep.subr.mxu0 0.0
        %1245 = vmatpush1.msra.mxu0 0.0
        %1246 = vmatprep.subr.mxu0 0.0
        %1247 = vmatpush1.msra.mxu0 0.0
        %1248 = vmatprep.subr.mxu0 0.0
        %1249 = vmatpush1.msra.mxu0 0.0
        %1250 = vmatprep.subr.mxu0 0.0
        %1251 = vmatpush1.msra.mxu0 0.0
        %1252 = vmatprep.subr.mxu0 0.0
        %1253 = vmatpush1.msra.mxu0 0.0
        %1254 = vmatprep.subr.mxu0 0.0
        %1255 = vmatpush1.msra.mxu0 0.0
        %1256 = vmatprep.subr.mxu0 0.0
        %1257 = vmatpush1.msra.mxu0 0.0
        %1258 = vmatprep.subr.mxu0 0.0
        %1259 = vmatpush1.msra.mxu0 0.0
        %1260 = vmatprep.subr.mxu0 0.0
        %1261 = vmatpush1.msra.mxu0 0.0
        %1262 = vmatprep.subr.mxu0 0.0
        %1263 = vmatpush1.msra.mxu0 0.0
        %1264 = vmatprep.subr.mxu0 0.0
        %1265 = vmatpush1.msra.mxu0 0.0
        %1266 = vmatprep.subr.mxu0 0.0
        %1267 = vmatpush1.msra.mxu0 0.0
        %1268 = vmatprep.subr.mxu0 0.0
        %1269 = vmatpush1.msra.mxu0 0.0
        %1270 = vmatprep.subr.mxu0 0.0
        %1271 = vmatpush1.msra.mxu0 0.0
        %1272 = vmatprep.mubr.f32.mxu0 %v1085
        %1273 = vmatmul.mubr.f32.gmra.mrb[0].mxu0 %v1043
        %v1274 = vpop.f32.mrb[0].mxu0
        %v1275 = vadd.f32 0.0, %v1274
        %v1276 = vpop.f32.mrb[0].mxu0
        %v1277 = vadd.f32 0.0, %v1276
        %1278 = vmatprep.mubr.f32.mxu0 %v1088
        %1279 = vmatmul.mubr.f32.gmra.mrb[0].mxu0 %v1045
        %v1280 = vpop.f32.mrb[0].mxu0
        %v1281 = vadd.f32 0.0, %v1280
        %v1282 = vpop.f32.mrb[0].mxu0
        %v1283 = vadd.f32 0.0, %v1282
        %1284 = vdwg.mxu0
        %s1285 = scalar_lea.vmem %s231, 64 [#allocation8]
        %1286 = vst [vmem:[%s1285 + $0x20] sm:$0xff] %v1275
        %1287 = vst [vmem:[%s1285 + $0x28] sm:$0xff] %v1277
        %1288 = vst [vmem:[%s1285 + $0x30] sm:$0xff] %v1281
        %1289 = vst [vmem:[%s1285 + $0x38] sm:$0xff] %v1283
        %s1290 = scalar_lea.vmem [#allocation2], 576
        %v1291 = vld [vmem:[%s1290] sm:$0xff]
        %v1292 = vld [vmem:[%s1290 + $0x8] sm:$0xff]
        %v1293 = vld [vmem:[%s1290 + $0x10] sm:$0xff]
        %v1294 = vld [vmem:[%s1290 + $0x18] sm:$0xff]
        %v1295 = vld [vmem:[%s1290 + $0x20] sm:$0xff]
        %v1296 = vld [vmem:[%s1290 + $0x28] sm:$0xff]
        %v1297 = vld [vmem:[%s1290 + $0x30] sm:$0xff]
        %v1298 = vld [vmem:[%s1290 + $0x38] sm:$0xff]
        %v1299 = vld [vmem:[%s1290 + $0x40] sm:$0xff]
        %v1300 = vld [vmem:[%s1290 + $0x48] sm:$0xff]
        %v1301 = vld [vmem:[%s1290 + $0x50] sm:$0xff]
        %v1302 = vld [vmem:[%s1290 + $0x58] sm:$0xff]
        %v1303 = vld [vmem:[%s1290 + $0x60] sm:$0xff]
        %v1304 = vld [vmem:[%s1290 + $0x68] sm:$0xff]
        %v1305 = vld [vmem:[%s1290 + $0x70] sm:$0xff]
        %v1306 = vld [vmem:[%s1290 + $0x78] sm:$0xff]
        %v1307 = vld [vmem:[%s1290 + $0x80] sm:$0xff]
        %v1308 = vld [vmem:[%s1290 + $0x88] sm:$0xff]
        %v1309 = vld [vmem:[%s1290 + $0x90] sm:$0xff]
        %v1310 = vld [vmem:[%s1290 + $0x98] sm:$0xff]
        %v1311 = vld [vmem:[%s1290 + $0xa0] sm:$0xff]
        %v1312 = vld [vmem:[%s1290 + $0xa8] sm:$0xff]
        %v1313 = vld [vmem:[%s1290 + $0xb0] sm:$0xff]
        %v1314 = vld [vmem:[%s1290 + $0xb8] sm:$0xff]
        %v1315 = vld [vmem:[%s1290 + $0xc0] sm:$0xff]
        %v1316 = vld [vmem:[%s1290 + $0xc8] sm:$0xff]
        %v1317 = vld [vmem:[%s1290 + $0xd0] sm:$0xff]
        %v1318 = vld [vmem:[%s1290 + $0xd8] sm:$0xff]
        %v1319 = vld [vmem:[%s1290 + $0xe0] sm:$0xff]
        %v1320 = vld [vmem:[%s1290 + $0xe8] sm:$0xff]
        %v1321 = vld [vmem:[%s1290 + $0xf0] sm:$0xff]
        %v1322 = vld [vmem:[%s1290 + $0xf8] sm:$0xff]
        %v1323 = vld [vmem:[%s1290 + $0x100] sm:$0xff]
        %v1324 = vld [vmem:[%s1290 + $0x108] sm:$0xff]
        %v1325 = vld [vmem:[%s1290 + $0x110] sm:$0xff]
        %v1326 = vld [vmem:[%s1290 + $0x118] sm:$0xff]
        %1327 = vmatprep.subr.mxu0 %v1292
        %1328 = vmatpush1.msra.mxu0 %v1291
        %1329 = vmatprep.subr.mxu0 %v1294
        %1330 = vmatpush1.msra.mxu0 %v1293
        %1331 = vmatprep.subr.mxu0 %v1296
        %1332 = vmatpush1.msra.mxu0 %v1295
        %1333 = vmatprep.subr.mxu0 %v1298
        %1334 = vmatpush1.msra.mxu0 %v1297
        %1335 = vmatprep.subr.mxu0 %v1300
        %1336 = vmatpush1.msra.mxu0 %v1299
        %1337 = vmatprep.subr.mxu0 %v1302
        %1338 = vmatpush1.msra.mxu0 %v1301
        %1339 = vmatprep.subr.mxu0 %v1304
        %1340 = vmatpush1.msra.mxu0 %v1303
        %1341 = vmatprep.subr.mxu0 %v1306
        %1342 = vmatpush1.msra.mxu0 %v1305
        %1343 = vmatprep.subr.mxu0 %v1308
        %1344 = vmatpush1.msra.mxu0 %v1307
        %1345 = vmatprep.subr.mxu0 %v1310
        %1346 = vmatpush1.msra.mxu0 %v1309
        %1347 = vmatprep.subr.mxu0 %v1312
        %1348 = vmatpush1.msra.mxu0 %v1311
        %1349 = vmatprep.subr.mxu0 %v1314
        %1350 = vmatpush1.msra.mxu0 %v1313
        %1351 = vmatprep.subr.mxu0 %v1316
        %1352 = vmatpush1.msra.mxu0 %v1315
        %1353 = vmatprep.subr.mxu0 %v1318
        %1354 = vmatpush1.msra.mxu0 %v1317
        %1355 = vmatprep.subr.mxu0 %v1320
        %1356 = vmatpush1.msra.mxu0 %v1319
        %1357 = vmatprep.subr.mxu0 %v1322
        %1358 = vmatpush1.msra.mxu0 %v1321
        %1359 = vmatprep.subr.mxu0 %v1324
        %1360 = vmatpush1.msra.mxu0 %v1323
        %1361 = vmatprep.subr.mxu0 %v1326
        %1362 = vmatpush1.msra.mxu0 %v1325
        %1363 = vmatprep.subr.mxu0 0.0
        %1364 = vmatpush1.msra.mxu0 0.0
        %1365 = vmatprep.subr.mxu0 0.0
        %1366 = vmatpush1.msra.mxu0 0.0
        %1367 = vmatprep.subr.mxu0 0.0
        %1368 = vmatpush1.msra.mxu0 0.0
        %1369 = vmatprep.subr.mxu0 0.0
        %1370 = vmatpush1.msra.mxu0 0.0
        %1371 = vmatprep.subr.mxu0 0.0
        %1372 = vmatpush1.msra.mxu0 0.0
        %1373 = vmatprep.subr.mxu0 0.0
        %1374 = vmatpush1.msra.mxu0 0.0
        %1375 = vmatprep.subr.mxu0 0.0
        %1376 = vmatpush1.msra.mxu0 0.0
        %1377 = vmatprep.subr.mxu0 0.0
        %1378 = vmatpush1.msra.mxu0 0.0
        %1379 = vmatprep.subr.mxu0 0.0
        %1380 = vmatpush1.msra.mxu0 0.0
        %1381 = vmatprep.subr.mxu0 0.0
        %1382 = vmatpush1.msra.mxu0 0.0
        %1383 = vmatprep.subr.mxu0 0.0
        %1384 = vmatpush1.msra.mxu0 0.0
        %1385 = vmatprep.subr.mxu0 0.0
        %1386 = vmatpush1.msra.mxu0 0.0
        %1387 = vmatprep.subr.mxu0 0.0
        %1388 = vmatpush1.msra.mxu0 0.0
        %1389 = vmatprep.subr.mxu0 0.0
        %1390 = vmatpush1.msra.mxu0 0.0
        %1391 = vmatprep.mubr.f32.mxu0 %v1085
        %1392 = vmatmul.mubr.f32.gmra.mrb[0].mxu0 %v1043
        %v1393 = vpop.f32.mrb[0].mxu0
        %v1394 = vadd.f32 0.0, %v1393
        %v1395 = vpop.f32.mrb[0].mxu0
        %v1396 = vadd.f32 0.0, %v1395
        %1397 = vmatprep.mubr.f32.mxu0 %v1088
        %1398 = vmatmul.mubr.f32.gmra.mrb[0].mxu0 %v1045
        %v1399 = vpop.f32.mrb[0].mxu0
        %v1400 = vadd.f32 0.0, %v1399
        %v1401 = vpop.f32.mrb[0].mxu0
        %v1402 = vadd.f32 0.0, %v1401
        %1403 = vdwg.mxu0
        %s1404 = scalar_lea.vmem %s231, 128 [#allocation8]
        %1405 = vst [vmem:[%s1404 + $0x20] sm:$0xff] %v1394
        %1406 = vst [vmem:[%s1404 + $0x28] sm:$0xff] %v1396
        %1407 = vst [vmem:[%s1404 + $0x30] sm:$0xff] %v1400
        %1408 = vst [vmem:[%s1404 + $0x38] sm:$0xff] %v1402
        %s1409 = scalar_lea.vmem [#allocation2], 864
        %v1410 = vld [vmem:[%s1409] sm:$0xff]
        %v1411 = vld [vmem:[%s1409 + $0x8] sm:$0xff]
        %v1412 = vld [vmem:[%s1409 + $0x10] sm:$0xff]
        %v1413 = vld [vmem:[%s1409 + $0x18] sm:$0xff]
        %v1414 = vld [vmem:[%s1409 + $0x20] sm:$0xff]
        %v1415 = vld [vmem:[%s1409 + $0x28] sm:$0xff]
        %v1416 = vld [vmem:[%s1409 + $0x30] sm:$0xff]
        %v1417 = vld [vmem:[%s1409 + $0x38] sm:$0xff]
        %v1418 = vld [vmem:[%s1409 + $0x40] sm:$0xff]
        %v1419 = vld [vmem:[%s1409 + $0x48] sm:$0xff]
        %v1420 = vld [vmem:[%s1409 + $0x50] sm:$0xff]
        %v1421 = vld [vmem:[%s1409 + $0x58] sm:$0xff]
        %v1422 = vld [vmem:[%s1409 + $0x60] sm:$0xff]
        %v1423 = vld [vmem:[%s1409 + $0x68] sm:$0xff]
        %v1424 = vld [vmem:[%s1409 + $0x70] sm:$0xff]
        %v1425 = vld [vmem:[%s1409 + $0x78] sm:$0xff]
        %v1426 = vld [vmem:[%s1409 + $0x80] sm:$0xff]
        %v1427 = vld [vmem:[%s1409 + $0x88] sm:$0xff]
        %v1428 = vld [vmem:[%s1409 + $0x90] sm:$0xff]
        %v1429 = vld [vmem:[%s1409 + $0x98] sm:$0xff]
        %v1430 = vld [vmem:[%s1409 + $0xa0] sm:$0xff]
        %v1431 = vld [vmem:[%s1409 + $0xa8] sm:$0xff]
        %v1432 = vld [vmem:[%s1409 + $0xb0] sm:$0xff]
        %v1433 = vld [vmem:[%s1409 + $0xb8] sm:$0xff]
        %v1434 = vld [vmem:[%s1409 + $0xc0] sm:$0xff]
        %v1435 = vld [vmem:[%s1409 + $0xc8] sm:$0xff]
        %v1436 = vld [vmem:[%s1409 + $0xd0] sm:$0xff]
        %v1437 = vld [vmem:[%s1409 + $0xd8] sm:$0xff]
        %v1438 = vld [vmem:[%s1409 + $0xe0] sm:$0xff]
        %v1439 = vld [vmem:[%s1409 + $0xe8] sm:$0xff]
        %v1440 = vld [vmem:[%s1409 + $0xf0] sm:$0xff]
        %v1441 = vld [vmem:[%s1409 + $0xf8] sm:$0xff]
        %v1442 = vld [vmem:[%s1409 + $0x100] sm:$0xff]
        %v1443 = vld [vmem:[%s1409 + $0x108] sm:$0xff]
        %v1444 = vld [vmem:[%s1409 + $0x110] sm:$0xff]
        %v1445 = vld [vmem:[%s1409 + $0x118] sm:$0xff]
        %1446 = vmatprep.subr.mxu0 %v1411
        %1447 = vmatpush1.msra.mxu0 %v1410
        %1448 = vmatprep.subr.mxu0 %v1413
        %1449 = vmatpush1.msra.mxu0 %v1412
        %1450 = vmatprep.subr.mxu0 %v1415
        %1451 = vmatpush1.msra.mxu0 %v1414
        %1452 = vmatprep.subr.mxu0 %v1417
        %1453 = vmatpush1.msra.mxu0 %v1416
        %1454 = vmatprep.subr.mxu0 %v1419
        %1455 = vmatpush1.msra.mxu0 %v1418
        %1456 = vmatprep.subr.mxu0 %v1421
        %1457 = vmatpush1.msra.mxu0 %v1420
        %1458 = vmatprep.subr.mxu0 %v1423
        %1459 = vmatpush1.msra.mxu0 %v1422
        %1460 = vmatprep.subr.mxu0 %v1425
        %1461 = vmatpush1.msra.mxu0 %v1424
        %1462 = vmatprep.subr.mxu0 %v1427
        %1463 = vmatpush1.msra.mxu0 %v1426
        %1464 = vmatprep.subr.mxu0 %v1429
        %1465 = vmatpush1.msra.mxu0 %v1428
        %1466 = vmatprep.subr.mxu0 %v1431
        %1467 = vmatpush1.msra.mxu0 %v1430
        %1468 = vmatprep.subr.mxu0 %v1433
        %1469 = vmatpush1.msra.mxu0 %v1432
        %1470 = vmatprep.subr.mxu0 %v1435
        %1471 = vmatpush1.msra.mxu0 %v1434
        %1472 = vmatprep.subr.mxu0 %v1437
        %1473 = vmatpush1.msra.mxu0 %v1436
        %1474 = vmatprep.subr.mxu0 %v1439
        %1475 = vmatpush1.msra.mxu0 %v1438
        %1476 = vmatprep.subr.mxu0 %v1441
        %1477 = vmatpush1.msra.mxu0 %v1440
        %1478 = vmatprep.subr.mxu0 %v1443
        %1479 = vmatpush1.msra.mxu0 %v1442
        %1480 = vmatprep.subr.mxu0 %v1445
        %1481 = vmatpush1.msra.mxu0 %v1444
        %1482 = vmatprep.subr.mxu0 0.0
        %1483 = vmatpush1.msra.mxu0 0.0
        %1484 = vmatprep.subr.mxu0 0.0
        %1485 = vmatpush1.msra.mxu0 0.0
        %1486 = vmatprep.subr.mxu0 0.0
        %1487 = vmatpush1.msra.mxu0 0.0
        %1488 = vmatprep.subr.mxu0 0.0
        %1489 = vmatpush1.msra.mxu0 0.0
        %1490 = vmatprep.subr.mxu0 0.0
        %1491 = vmatpush1.msra.mxu0 0.0
        %1492 = vmatprep.subr.mxu0 0.0
        %1493 = vmatpush1.msra.mxu0 0.0
        %1494 = vmatprep.subr.mxu0 0.0
        %1495 = vmatpush1.msra.mxu0 0.0
        %1496 = vmatprep.subr.mxu0 0.0
        %1497 = vmatpush1.msra.mxu0 0.0
        %1498 = vmatprep.subr.mxu0 0.0
        %1499 = vmatpush1.msra.mxu0 0.0
        %1500 = vmatprep.subr.mxu0 0.0
        %1501 = vmatpush1.msra.mxu0 0.0
        %1502 = vmatprep.subr.mxu0 0.0
        %1503 = vmatpush1.msra.mxu0 0.0
        %1504 = vmatprep.subr.mxu0 0.0
        %1505 = vmatpush1.msra.mxu0 0.0
        %1506 = vmatprep.subr.mxu0 0.0
        %1507 = vmatpush1.msra.mxu0 0.0
        %1508 = vmatprep.subr.mxu0 0.0
        %1509 = vmatpush1.msra.mxu0 0.0
        %1510 = vmatprep.mubr.f32.mxu0 %v1085
        %1511 = vmatmul.mubr.f32.gmra.mrb[0].mxu0 %v1043
        %v1512 = vpop.f32.mrb[0].mxu0
        %v1513 = vadd.f32 0.0, %v1512
        %v1514 = vpop.f32.mrb[0].mxu0
        %v1515 = vadd.f32 0.0, %v1514
        %1516 = vmatprep.mubr.f32.mxu0 %v1088
        %1517 = vmatmul.mubr.f32.gmra.mrb[0].mxu0 %v1045
        %v1518 = vpop.f32.mrb[0].mxu0
        %v1519 = vadd.f32 0.0, %v1518
        %v1520 = vpop.f32.mrb[0].mxu0
        %v1521 = vadd.f32 0.0, %v1520
        %1522 = vdwg.mxu0
        %s1523 = scalar_lea.vmem %s231, 192 [#allocation8]
        %1524 = vst [vmem:[%s1523 + $0x20] sm:$0xff] %v1513
        %1525 = vst [vmem:[%s1523 + $0x28] sm:$0xff] %v1515
        %1526 = vst [vmem:[%s1523 + $0x30] sm:$0xff] %v1519
        %1527 = vst [vmem:[%s1523 + $0x38] sm:$0xff] %v1521
        %s1528 = sand.u32 %s119, 1
        %s1529 = scalar_lea.sflag [#allocation5], %s1528
        %s1530 = sand.u32 %s119, 1
        %s1531 = smul.addr %s1530, 256
        %s1532 = scalar_lea.vmem [#allocation8], %s1531
        // Predicated region
        $region45: #{tpu_custom_call.1} parent=35 // pred_check
          %p1533 = pneg %p129
        $region46: #{tpu_custom_call.1} parent=35 // pred_check_branch
          %1535 = sbr.rel (%p1533) target = $region48
        $region47: #{tpu_custom_call.1} parent=35 // pred_region
          %s1536 = smul.u32 4, %s22
          %s1538 = ssub.s32 4096, 4096
          %1539 = vsyncadd %s1529, %s1538
          %s1540 = smul.addr %s1536, 8
          %s1541 = smul.addr %s1540, 128
          %s1542 = scalar_lea.hbm %s4, %s1541
          %s1543 = sshll.u32 %s1532, 4
          %s1544 = int_to_ptr.vmem [resolvable:$true] %s1543
          %1549 = dma.vmem_to_hbm [thread:$0]  %s1544, 4096, %s1542, %s1529, 256, 256, 16
        $region48: #{tpu_custom_call.1} parent=35 // pred_fallthru
          _
      $region36: #{tpu_custom_call.1} parent=5 // pred_fallthru
        _
      %p1550 = scmp.le.s32.totalorder 2, %s17
      // Predicated region
      $region49: #{tpu_custom_call.1} parent=5 // pred_check
        %p1551 = pneg %p1550
      $region50: #{tpu_custom_call.1} parent=5 // pred_check_branch
        %1553 = sbr.rel (%p1551) target = $region52
      $region51: #{tpu_custom_call.1} parent=5 // pred_region
        %s1554 = ssub.s32 %s17, 2
        // Predicated region
        $region53: #{tpu_custom_call.1} parent=51 // pred_check
          %p1555 = pneg %p135
        $region54: #{tpu_custom_call.1} parent=51 // pred_check_branch
          %1557 = sbr.rel (%p1555) target = $region56
        $region55: #{tpu_custom_call.1} parent=51 // pred_region
          %s1558 = sand.u32 %s120, 1
          %s1559 = scalar_lea.sflag [#allocation5], %s1558
          %s1560 = sand.u32 %s120, 1
          %s1561 = smul.addr %s1560, 256
          %s1562 = scalar_lea.vmem [#allocation8], %s1561
          %1563 = dma.done %s1559, 4096
        $region56: #{tpu_custom_call.1} parent=51 // pred_fallthru
          _
      $region52: #{tpu_custom_call.1} parent=5 // pred_fallthru
        _
    $region6: #{tpu_custom_call.1} parent=1 // loop_footer
      %s21 = sadd.s32 1, %s17
    $region7: #{tpu_custom_call.1} parent=1 // loop_footer_branch
      %16 = sbr.rel target = $region3
    $region8: #{tpu_custom_call.1} parent=1 // loop_exit
      _
    %1564 = vsyncpa [#allocation4], 1
    %s1565 = scalar_lea.sflag [#allocation4], 1
    %1566 = vsyncpa %s1565, 1
    %1567 = vsyncpa [#allocation7], 1
    %1568 = vsyncpa [#allocation5], 1
    %s1569 = scalar_lea.sflag [#allocation5], 1
    %1570 = vsyncpa %s1569, 1

</llo_original>
